<compile_context>
chip_gen: v6e
topology: v6e:2x2x1
jax: 0.10.0
libtpu: 0.0.40
codegen_flags: <defaults>
</compile_context>

<pallas_src>
import functools

import jax
import jax.numpy as jnp
from jax import lax
from jax.experimental import pallas as pl
from jax.experimental.pallas import tpu as pltpu


def _round_up(x, m):
    return ((x + m - 1) // m) * m


# ----------------------------------------------------------------------------
# Fused kernel: all LSTM layers + FC head, single invocation (no grid).
# PyTorch gate order: i, f, g, o.
# ----------------------------------------------------------------------------
def _fused_lstm_kernel(num_layers, T, BP, H, *refs):
    x_ref = refs[0]                                       # (T*BP, I)   bf16
    layer_refs = [tuple(refs[1 + 3 * l: 4 + 3 * l]) for l in range(num_layers)]
    fc_w_ref = refs[1 + 3 * num_layers]                   # (H, OP)     f32
    fc_b_ref = refs[2 + 3 * num_layers]                   # (1, OP)     f32
    out_ref = refs[3 + 3 * num_layers]                    # (BP, OP)    f32
    gx_ref = refs[4 + 3 * num_layers]                     # (T*BP, 4H)  f32 scratch
    hseq_ref = refs[5 + 3 * num_layers]                   # (T*BP, HP)  f32 scratch

    G = 4 * H
    HP = hseq_ref.shape[1]          # lane-dense inter-layer width (>= H)
    pad_w = HP - H

    # Gate-activation constants, hoisted out of the time loop.
    # sigmoid(x) = 0.5 * tanh(0.5 * x) + 0.5  ->  one full-width EUP tanh covers
    # i/f/o (sigmoid) and g (tanh) via a column-wise scale + offset.
    col = lax.broadcasted_iota(jnp.int32, (BP, G), 1)
    is_g = jnp.logical_and(col >= 2 * H, col < 3 * H)
    scale = jnp.where(is_g, 1.0, 0.5).astype(jnp.float32)   # pre == post scale
    offset = jnp.where(is_g, 0.0, 0.5).astype(jnp.float32)
    # Hoisted lane-pad constant (broadcast_in_dim is not CSE'd inside loops).
    zero_pad = (jnp.zeros((BP, pad_w), jnp.float32) if pad_w else None)

    h = None
    for layer in range(num_layers):
        w_ih_ref, w_hh_ref, b_ref = layer_refs[layer]
        # bf16 operands at the dot boundary only; f32 accumulation.
        if layer == 0:
            inp = x_ref[...]                                      # already bf16
        else:
            inp = hseq_ref[...].astype(jnp.bfloat16)              # lane-dense LHS
        # Hoisted input projection for the whole sequence: one big MXU matmul
        # off the serial recurrence path, bias added once.
        gx_ref[...] = (
            jnp.dot(inp, w_ih_ref[...], preferred_element_type=jnp.float32)
            + b_ref[...]
        )
        w_hh = w_hh_ref[...]                        # (H, 4H) bf16, loaded once
        store_seq = layer != num_layers - 1         # last layer: only h_T used

        def step(t, carry, w_hh=w_hh, store_seq=store_seq):
            h, c = carry
            row = pl.multiple_of(t * BP, BP)
            gates = gx_ref[pl.ds(row, BP), :] + jnp.dot(
                h.astype(jnp.bfloat16), w_hh,
                preferred_element_type=jnp.float32)                # (BP, 4H) f32
            act = jnp.tanh(gates * scale) * scale + offset         # i,f,o:sig g:tanh
            i_g = act[:, 0 * H:1 * H]
            f_g = act[:, 1 * H:2 * H]
            g_g = act[:, 2 * H:3 * H]
            o_g = act[:, 3 * H:4 * H]
            c_new = f_g * c + i_g * g_g
            h_new = o_g * jnp.tanh(c_new)
            if store_seq:
                # Full-width (lane-dense) store; padded lanes carry zeros which
                # are mathematically inert against the zero-row-padded W_ih.
                if pad_w:
                    hseq_ref[pl.ds(row, BP), :] = jnp.concatenate(
                        [h_new, zero_pad], axis=-1)
                else:
                    hseq_ref[pl.ds(row, BP), :] = h_new
            return (h_new, c_new)

        h, _ = lax.fori_loop(
            0, T, step,
            (jnp.zeros((BP, H), jnp.float32), jnp.zeros((BP, H), jnp.float32)),
            unroll=True)

    # dropout(p=0.2) on the last time step is identity in eval mode.
    out_ref[...] = (
        jnp.dot(h, fc_w_ref[...], preferred_element_type=jnp.float32)
        + fc_b_ref[...]
    )


# ----------------------------------------------------------------------------
# One-time weight preparation (hoisted out of the per-call path).
# Raw params follow nn.LSTM / nn.Linear layouts exactly.
# ----------------------------------------------------------------------------
def prepare_params(raw_params, hidden_size):
    H = hidden_size
    HP = _round_up(H, 128)
    lstm = []
    for layer, (w_ih, w_hh, b_ih, b_hh) in enumerate(raw_params["lstm"]):
        w_ih_t = jnp.asarray(w_ih, jnp.float32).T            # (in_f, 4H)
        if layer > 0 and w_ih_t.shape[0] < HP:
            # Zero contraction rows make the lane-dense hseq padding inert.
            w_ih_t = jnp.pad(w_ih_t, ((0, HP - w_ih_t.shape[0]), (0, 0)))
        w_hh_t = jnp.asarray(w_hh, jnp.float32).T             # (H, 4H)
        b = (jnp.asarray(b_ih, jnp.float32)
             + jnp.asarray(b_hh, jnp.float32)).reshape(1, 4 * H)
        lstm.append((w_ih_t.astype(jnp.bfloat16),
                     w_hh_t.astype(jnp.bfloat16),
                     b))

    O = raw_params["fc_w"].shape[0]
    OP = _round_up(O, 128)
    fc_w_t = jnp.asarray(raw_params["fc_w"], jnp.float32).T   # (H, O)
    fc_b = jnp.asarray(raw_params["fc_b"], jnp.float32).reshape(1, O)
    if OP != O:
        fc_w_t = jnp.pad(fc_w_t, ((0, 0), (0, OP - O)))
        fc_b = jnp.pad(fc_b, ((0, 0), (0, OP - O)))
    return {"lstm": lstm, "fc_w_t": fc_w_t, "fc_b": fc_b}


# ----------------------------------------------------------------------------
# Wrapper (matches PyTorchMultivariateLSTM.forward, eval mode).
# ----------------------------------------------------------------------------
def multivariate_lstm_forward(x_bti, prepped, hidden_size, output_size):
    # x_bti: (B, T, input_size)  -- PyTorch batch_first layout
    B, T, I = x_bti.shape
    H = hidden_size
    num_layers = len(prepped["lstm"])
    OP = prepped["fc_w_t"].shape[1]
    HP = (prepped["lstm"][1][0].shape[0] if num_layers > 1
          else _round_up(H, 128))

    BP = _round_up(B, 8)             # pad batch to full sublanes

    x = x_bti.astype(jnp.float32)
    if BP != B:
        x = jnp.pad(x, ((0, BP - B), (0, 0), (0, 0)))
    # batch_first (B,T,I) -> time-major, flattened, bf16 at the matmul boundary
    x_flat = jnp.transpose(x, (1, 0, 2)).reshape(T * BP, I).astype(jnp.bfloat16)

    flat_weights = []
    for (w_ih_t, w_hh_t, b) in prepped["lstm"]:
        flat_weights += [w_ih_t, w_hh_t, b]

    n_in = 1 + len(flat_weights) + 2
    out = pl.pallas_call(
        functools.partial(_fused_lstm_kernel, num_layers, T, BP, H),
        out_shape=jax.ShapeDtypeStruct((BP, OP), jnp.float32),
        in_specs=[pl.BlockSpec(memory_space=pltpu.MemorySpace.VMEM)] * n_in,
        out_specs=pl.BlockSpec(memory_space=pltpu.MemorySpace.VMEM),
        scratch_shapes=[
            pltpu.VMEM((T * BP, 4 * H), jnp.float32),   # hoisted input projection
            pltpu.VMEM((T * BP, HP), jnp.float32),      # lane-dense inter-layer h
        ],
    )(x_flat, *flat_weights, prepped["fc_w_t"], prepped["fc_b"])
    return out[:B, :output_size]


# ----------------------------------------------------------------------------
# Deterministic parameter init (exact nn.LSTM / nn.Linear layouts & init range).
# ----------------------------------------------------------------------------
def init_params(key, input_size, hidden_size, num_layers, output_size):
    H = hidden_size
    k = 1.0 / jnp.sqrt(jnp.float32(H))
    lstm = []
    for layer in range(num_layers):
        in_f = input_size if layer == 0 else H
        key, k1, k2, k3, k4 = jax.random.split(key, 5)
        w_ih = jax.random.uniform(k1, (4 * H, in_f), jnp.float32, -k, k)
        w_hh = jax.random.uniform(k2, (4 * H, H), jnp.float32, -k, k)
        b_ih = jax.random.uniform(k3, (4 * H,), jnp.float32, -k, k)
        b_hh = jax.random.uniform(k4, (4 * H,), jnp.float32, -k, k)
        lstm.append((w_ih, w_hh, b_ih, b_hh))
    key, k5, k6 = jax.random.split(key, 3)
    fc_w = jax.random.uniform(k5, (output_size, H), jnp.float32, -k, k)
    fc_b = jax.random.uniform(k6, (output_size,), jnp.float32, -k, k)
    return {"lstm": lstm, "fc_w": fc_w, "fc_b": fc_b}


# ----------------------------------------------------------------------------
# Pure-JAX f32 reference (PyTorch semantics) for correctness check.
# ----------------------------------------------------------------------------
def reference_forward(x_bti, raw_params, hidden_size):
    H = hidden_size
    x = jnp.transpose(x_bti, (1, 0, 2)).astype(jnp.float32)    # (T, B, I)
    B = x.shape[1]
    for (w_ih, w_hh, b_ih, b_hh) in raw_params["lstm"]:
        w_ih_t, w_hh_t = w_ih.T, w_hh.T
        b = (b_ih + b_hh).reshape(1, -1)

        def step(carry, x_t, w_ih_t=w_ih_t, w_hh_t=w_hh_t, b=b):
            h, c = carry
            gates = x_t @ w_ih_t + h @ w_hh_t + b
            i = jax.nn.sigmoid(gates[:, 0 * H:1 * H])
            f = jax.nn.sigmoid(gates[:, 1 * H:2 * H])
            g = jnp.tanh(gates[:, 2 * H:3 * H])
            o = jax.nn.sigmoid(gates[:, 3 * H:4 * H])
            c = f * c + i * g
            h = o * jnp.tanh(c)
            return (h, c), h

        init = (jnp.zeros((B, H), jnp.float32), jnp.zeros((B, H), jnp.float32))
        _, x = lax.scan(step, init, x)
    return x[-1] @ raw_params["fc_w"].T + raw_params["fc_b"]


if __name__ == "__main__":
    # Small shapes consistent with the module's forward.
    B, T = 2, 8               # batch, sequence length
    INPUT_SIZE = 4            # multivariate feature count
    HIDDEN = 32
    NUM_LAYERS = 2
    OUTPUT_SIZE = 1

    key = jax.random.PRNGKey(0)
    key, pkey, xkey = jax.random.split(key, 3)
    raw_params = init_params(pkey, INPUT_SIZE, HIDDEN, NUM_LAYERS, OUTPUT_SIZE)
    prepped = prepare_params(raw_params, HIDDEN)        # one-time weight prep
    x = jax.random.normal(xkey, (B, T, INPUT_SIZE), jnp.float32)

    fwd = jax.jit(functools.partial(multivariate_lstm_forward,
                                    hidden_size=HIDDEN,
                                    output_size=OUTPUT_SIZE))
    out = jax.block_until_ready(fwd(x, prepped))

    ref = reference_forward(x, raw_params, HIDDEN)
    assert out.shape == (B, OUTPUT_SIZE), out.shape
    # bf16 matmul operands (f32 accumulate) vs pure-f32 reference -> relaxed tol.
    assert jnp.allclose(out, ref, atol=5e-2, rtol=5e-2), (out, ref)

    print("KERNEL_OK")
</pallas_src>

<mosaic_0001>
module attributes {stable_mosaic.version = 11 : i64} {
  func.func @_fused_lstm_kernel(%arg0: memref<64x4xbf16, #tpu.memory_space<vmem>>, %arg1: memref<4x128xbf16, #tpu.memory_space<vmem>>, %arg2: memref<32x128xbf16, #tpu.memory_space<vmem>>, %arg3: memref<1x128xf32, #tpu.memory_space<vmem>>, %arg4: memref<128x128xbf16, #tpu.memory_space<vmem>>, %arg5: memref<32x128xbf16, #tpu.memory_space<vmem>>, %arg6: memref<1x128xf32, #tpu.memory_space<vmem>>, %arg7: memref<32x128xf32, #tpu.memory_space<vmem>>, %arg8: memref<1x128xf32, #tpu.memory_space<vmem>>, %arg9: memref<8x128xf32, #tpu.memory_space<vmem>>, %arg10: memref<64x128xf32, #tpu.memory_space<vmem>>, %arg11: memref<64x128xf32, #tpu.memory_space<vmem>>) attributes {dimension_semantics = [], scalar_prefetch = 0 : i64, scratch_operands = 2 : i64, tpu.core_type = #tpu.core_type<tc>} {
    %0 = tpu.iota {dimensions = array<i32: 1>} : vector<8x128xi32>
    %c64_i32 = arith.constant 64 : i32
    %1 = vector.broadcast %c64_i32 : i32 to vector<8x128xi32>
    %2 = arith.cmpi sge, %0, %1 : vector<8x128xi32>
    %c96_i32 = arith.constant 96 : i32
    %3 = vector.broadcast %c96_i32 : i32 to vector<8x128xi32>
    %4 = arith.cmpi slt, %0, %3 : vector<8x128xi32>
    %5 = arith.andi %2, %4 : vector<8x128xi1>
    %cst = arith.constant 1.000000e+00 : f32
    %cst_0 = arith.constant 5.000000e-01 : f32
    %6 = vector.broadcast %cst : f32 to vector<8x128xf32>
    %7 = vector.broadcast %cst_0 : f32 to vector<8x128xf32>
    %8 = arith.select %5, %6, %7 : vector<8x128xi1>, vector<8x128xf32>
    %cst_1 = arith.constant 0.000000e+00 : f32
    %cst_2 = arith.constant 5.000000e-01 : f32
    %9 = vector.broadcast %cst_1 : f32 to vector<8x128xf32>
    %10 = vector.broadcast %cst_2 : f32 to vector<8x128xf32>
    %11 = arith.select %5, %9, %10 : vector<8x128xi1>, vector<8x128xf32>
    %cst_3 = arith.constant 0.000000e+00 : f32
    %12 = vector.broadcast %cst_3 : f32 to vector<8x96xf32>
    %c0 = arith.constant 0 : index
    %c0_4 = arith.constant 0 : index
    %13 = vector.load %arg0[%c0, %c0_4] : memref<64x4xbf16, #tpu.memory_space<vmem>>, vector<64x4xbf16>
    %c0_5 = arith.constant 0 : index
    %c0_6 = arith.constant 0 : index
    %14 = vector.load %arg1[%c0_5, %c0_6] : memref<4x128xbf16, #tpu.memory_space<vmem>>, vector<4x128xbf16>
    %cst_7 = arith.constant dense<0.000000e+00> : vector<64x128xf32>
    %15 = tpu.matmul %13, %14, %cst_7 {dimension_numbers = #tpu.dot_dimension_numbers<[1], [0], [0], [1], [0, 0, 1, 1], [], []>} : vector<64x4xbf16>, vector<4x128xbf16>, vector<64x128xf32> -> vector<64x128xf32>
    %c0_8 = arith.constant 0 : index
    %c0_9 = arith.constant 0 : index
    %16 = vector.load %arg3[%c0_8, %c0_9] : memref<1x128xf32, #tpu.memory_space<vmem>>, vector<1x128xf32>
    %17 = vector.broadcast %16 : vector<1x128xf32> to vector<64x128xf32>
    %18 = arith.addf %15, %17 : vector<64x128xf32>
    %c0_10 = arith.constant 0 : index
    %c0_11 = arith.constant 0 : index
    %19 = vector.load %arg10[%c0_10, %c0_11] : memref<64x128xf32, #tpu.memory_space<vmem>>, vector<64x128xf32>
    tpu.vector_store %arg10[%c0_10, %c0_11], %18 {strides = array<i32>} : memref<64x128xf32, #tpu.memory_space<vmem>>, vector<64x128xf32>,
    %c0_12 = arith.constant 0 : index
    %c0_13 = arith.constant 0 : index
    %20 = vector.load %arg2[%c0_12, %c0_13] : memref<32x128xbf16, #tpu.memory_space<vmem>>, vector<32x128xbf16>
    %cst_14 = arith.constant 0.000000e+00 : f32
    %21 = vector.broadcast %cst_14 : f32 to vector<8x32xf32>
    %cst_15 = arith.constant 0.000000e+00 : f32
    %22 = vector.broadcast %cst_15 : f32 to vector<8x32xf32>
    %c0_i32 = arith.constant 0 : i32
    %c8_i32 = arith.constant 8 : i32
    %23 = arith.muli %c0_i32, %c8_i32 : i32
    %24 = tpu.assume_multiple %23, 8 : i32
    %25 = arith.index_cast %24 : i32 to index
    %c0_16 = arith.constant 0 : index
    %26 = vector.load %arg10[%25, %c0_16] : memref<64x128xf32, #tpu.memory_space<vmem>>, vector<8x128xf32>
    %27 = arith.truncf %21 : vector<8x32xf32> to vector<8x32xbf16>
    %cst_17 = arith.constant dense<0.000000e+00> : vector<8x128xf32>
    %28 = tpu.matmul %27, %20, %cst_17 {dimension_numbers = #tpu.dot_dimension_numbers<[1], [0], [0], [1], [0, 0, 1, 1], [], []>} : vector<8x32xbf16>, vector<32x128xbf16>, vector<8x128xf32> -> vector<8x128xf32>
    %29 = arith.addf %26, %28 : vector<8x128xf32>
    %30 = arith.mulf %29, %8 : vector<8x128xf32>
    %31 = math.tanh %30 : vector<8x128xf32>
    %32 = arith.mulf %31, %8 : vector<8x128xf32>
    %33 = arith.addf %32, %11 : vector<8x128xf32>
    %34 = vector.extract_strided_slice %33 {offsets = [0, 0], sizes = [8, 32], strides = [1, 1]} : vector<8x128xf32> to vector<8x32xf32>
    %35 = vector.extract_strided_slice %33 {offsets = [0, 32], sizes = [8, 32], strides = [1, 1]} : vector<8x128xf32> to vector<8x32xf32>
    %36 = vector.extract_strided_slice %33 {offsets = [0, 64], sizes = [8, 32], strides = [1, 1]} : vector<8x128xf32> to vector<8x32xf32>
    %37 = vector.extract_strided_slice %33 {offsets = [0, 96], sizes = [8, 32], strides = [1, 1]} : vector<8x128xf32> to vector<8x32xf32>
    %38 = arith.mulf %35, %22 : vector<8x32xf32>
    %39 = arith.mulf %34, %36 : vector<8x32xf32>
    %40 = arith.addf %38, %39 : vector<8x32xf32>
    %41 = math.tanh %40 : vector<8x32xf32>
    %42 = arith.mulf %37, %41 : vector<8x32xf32>
    %43 = tpu.concatenate %42, %12 in 1 : vector<8x32xf32>, vector<8x96xf32> -> vector<8x128xf32>
    %44 = arith.index_cast %24 : i32 to index
    %c0_18 = arith.constant 0 : index
    %45 = vector.load %arg11[%44, %c0_18] : memref<64x128xf32, #tpu.memory_space<vmem>>, vector<8x128xf32>
    tpu.vector_store %arg11[%44, %c0_18], %43 {strides = array<i32>} : memref<64x128xf32, #tpu.memory_space<vmem>>, vector<8x128xf32>,
    %c1_i32 = arith.constant 1 : i32
    %c8_i32_19 = arith.constant 8 : i32
    %46 = arith.muli %c1_i32, %c8_i32_19 : i32
    %47 = tpu.assume_multiple %46, 8 : i32
    %48 = arith.index_cast %47 : i32 to index
    %c0_20 = arith.constant 0 : index
    %49 = vector.load %arg10[%48, %c0_20] : memref<64x128xf32, #tpu.memory_space<vmem>>, vector<8x128xf32>
    %50 = arith.truncf %42 : vector<8x32xf32> to vector<8x32xbf16>
    %cst_21 = arith.constant dense<0.000000e+00> : vector<8x128xf32>
    %51 = tpu.matmul %50, %20, %cst_21 {dimension_numbers = #tpu.dot_dimension_numbers<[1], [0], [0], [1], [0, 0, 1, 1], [], []>} : vector<8x32xbf16>, vector<32x128xbf16>, vector<8x128xf32> -> vector<8x128xf32>
    %52 = arith.addf %49, %51 : vector<8x128xf32>
    %53 = arith.mulf %52, %8 : vector<8x128xf32>
    %54 = math.tanh %53 : vector<8x128xf32>
    %55 = arith.mulf %54, %8 : vector<8x128xf32>
    %56 = arith.addf %55, %11 : vector<8x128xf32>
    %57 = vector.extract_strided_slice %56 {offsets = [0, 0], sizes = [8, 32], strides = [1, 1]} : vector<8x128xf32> to vector<8x32xf32>
    %58 = vector.extract_strided_slice %56 {offsets = [0, 32], sizes = [8, 32], strides = [1, 1]} : vector<8x128xf32> to vector<8x32xf32>
    %59 = vector.extract_strided_slice %56 {offsets = [0, 64], sizes = [8, 32], strides = [1, 1]} : vector<8x128xf32> to vector<8x32xf32>
    %60 = vector.extract_strided_slice %56 {offsets = [0, 96], sizes = [8, 32], strides = [1, 1]} : vector<8x128xf32> to vector<8x32xf32>
    %61 = arith.mulf %58, %40 : vector<8x32xf32>
    %62 = arith.mulf %57, %59 : vector<8x32xf32>
    %63 = arith.addf %61, %62 : vector<8x32xf32>
    %64 = math.tanh %63 : vector<8x32xf32>
    %65 = arith.mulf %60, %64 : vector<8x32xf32>
    %66 = tpu.concatenate %65, %12 in 1 : vector<8x32xf32>, vector<8x96xf32> -> vector<8x128xf32>
    %67 = arith.index_cast %47 : i32 to index
    %c0_22 = arith.constant 0 : index
    %68 = vector.load %arg11[%67, %c0_22] : memref<64x128xf32, #tpu.memory_space<vmem>>, vector<8x128xf32>
    tpu.vector_store %arg11[%67, %c0_22], %66 {strides = array<i32>} : memref<64x128xf32, #tpu.memory_space<vmem>>, vector<8x128xf32>,
    %c2_i32 = arith.constant 2 : i32
    %c8_i32_23 = arith.constant 8 : i32
    %69 = arith.muli %c2_i32, %c8_i32_23 : i32
    %70 = tpu.assume_multiple %69, 8 : i32
    %71 = arith.index_cast %70 : i32 to index
    %c0_24 = arith.constant 0 : index
    %72 = vector.load %arg10[%71, %c0_24] : memref<64x128xf32, #tpu.memory_space<vmem>>, vector<8x128xf32>
    %73 = arith.truncf %65 : vector<8x32xf32> to vector<8x32xbf16>
    %cst_25 = arith.constant dense<0.000000e+00> : vector<8x128xf32>
    %74 = tpu.matmul %73, %20, %cst_25 {dimension_numbers = #tpu.dot_dimension_numbers<[1], [0], [0], [1], [0, 0, 1, 1], [], []>} : vector<8x32xbf16>, vector<32x128xbf16>, vector<8x128xf32> -> vector<8x128xf32>
    %75 = arith.addf %72, %74 : vector<8x128xf32>
    %76 = arith.mulf %75, %8 : vector<8x128xf32>
    %77 = math.tanh %76 : vector<8x128xf32>
    %78 = arith.mulf %77, %8 : vector<8x128xf32>
    %79 = arith.addf %78, %11 : vector<8x128xf32>
    %80 = vector.extract_strided_slice %79 {offsets = [0, 0], sizes = [8, 32], strides = [1, 1]} : vector<8x128xf32> to vector<8x32xf32>
    %81 = vector.extract_strided_slice %79 {offsets = [0, 32], sizes = [8, 32], strides = [1, 1]} : vector<8x128xf32> to vector<8x32xf32>
    %82 = vector.extract_strided_slice %79 {offsets = [0, 64], sizes = [8, 32], strides = [1, 1]} : vector<8x128xf32> to vector<8x32xf32>
    %83 = vector.extract_strided_slice %79 {offsets = [0, 96], sizes = [8, 32], strides = [1, 1]} : vector<8x128xf32> to vector<8x32xf32>
    %84 = arith.mulf %81, %63 : vector<8x32xf32>
    %85 = arith.mulf %80, %82 : vector<8x32xf32>
    %86 = arith.addf %84, %85 : vector<8x32xf32>
    %87 = math.tanh %86 : vector<8x32xf32>
    %88 = arith.mulf %83, %87 : vector<8x32xf32>
    %89 = tpu.concatenate %88, %12 in 1 : vector<8x32xf32>, vector<8x96xf32> -> vector<8x128xf32>
    %90 = arith.index_cast %70 : i32 to index
    %c0_26 = arith.constant 0 : index
    %91 = vector.load %arg11[%90, %c0_26] : memref<64x128xf32, #tpu.memory_space<vmem>>, vector<8x128xf32>
    tpu.vector_store %arg11[%90, %c0_26], %89 {strides = array<i32>} : memref<64x128xf32, #tpu.memory_space<vmem>>, vector<8x128xf32>,
    %c3_i32 = arith.constant 3 : i32
    %c8_i32_27 = arith.constant 8 : i32
    %92 = arith.muli %c3_i32, %c8_i32_27 : i32
    %93 = tpu.assume_multiple %92, 8 : i32
    %94 = arith.index_cast %93 : i32 to index
    %c0_28 = arith.constant 0 : index
    %95 = vector.load %arg10[%94, %c0_28] : memref<64x128xf32, #tpu.memory_space<vmem>>, vector<8x128xf32>
    %96 = arith.truncf %88 : vector<8x32xf32> to vector<8x32xbf16>
    %cst_29 = arith.constant dense<0.000000e+00> : vector<8x128xf32>
    %97 = tpu.matmul %96, %20, %cst_29 {dimension_numbers = #tpu.dot_dimension_numbers<[1], [0], [0], [1], [0, 0, 1, 1], [], []>} : vector<8x32xbf16>, vector<32x128xbf16>, vector<8x128xf32> -> vector<8x128xf32>
    %98 = arith.addf %95, %97 : vector<8x128xf32>
    %99 = arith.mulf %98, %8 : vector<8x128xf32>
    %100 = math.tanh %99 : vector<8x128xf32>
    %101 = arith.mulf %100, %8 : vector<8x128xf32>
    %102 = arith.addf %101, %11 : vector<8x128xf32>
    %103 = vector.extract_strided_slice %102 {offsets = [0, 0], sizes = [8, 32], strides = [1, 1]} : vector<8x128xf32> to vector<8x32xf32>
    %104 = vector.extract_strided_slice %102 {offsets = [0, 32], sizes = [8, 32], strides = [1, 1]} : vector<8x128xf32> to vector<8x32xf32>
    %105 = vector.extract_strided_slice %102 {offsets = [0, 64], sizes = [8, 32], strides = [1, 1]} : vector<8x128xf32> to vector<8x32xf32>
    %106 = vector.extract_strided_slice %102 {offsets = [0, 96], sizes = [8, 32], strides = [1, 1]} : vector<8x128xf32> to vector<8x32xf32>
    %107 = arith.mulf %104, %86 : vector<8x32xf32>
    %108 = arith.mulf %103, %105 : vector<8x32xf32>
    %109 = arith.addf %107, %108 : vector<8x32xf32>
    %110 = math.tanh %109 : vector<8x32xf32>
    %111 = arith.mulf %106, %110 : vector<8x32xf32>
    %112 = tpu.concatenate %111, %12 in 1 : vector<8x32xf32>, vector<8x96xf32> -> vector<8x128xf32>
    %113 = arith.index_cast %93 : i32 to index
    %c0_30 = arith.constant 0 : index
    %114 = vector.load %arg11[%113, %c0_30] : memref<64x128xf32, #tpu.memory_space<vmem>>, vector<8x128xf32>
    tpu.vector_store %arg11[%113, %c0_30], %112 {strides = array<i32>} : memref<64x128xf32, #tpu.memory_space<vmem>>, vector<8x128xf32>,
    %c4_i32 = arith.constant 4 : i32
    %c8_i32_31 = arith.constant 8 : i32
    %115 = arith.muli %c4_i32, %c8_i32_31 : i32
    %116 = tpu.assume_multiple %115, 8 : i32
    %117 = arith.index_cast %116 : i32 to index
    %c0_32 = arith.constant 0 : index
    %118 = vector.load %arg10[%117, %c0_32] : memref<64x128xf32, #tpu.memory_space<vmem>>, vector<8x128xf32>
    %119 = arith.truncf %111 : vector<8x32xf32> to vector<8x32xbf16>
    %cst_33 = arith.constant dense<0.000000e+00> : vector<8x128xf32>
    %120 = tpu.matmul %119, %20, %cst_33 {dimension_numbers = #tpu.dot_dimension_numbers<[1], [0], [0], [1], [0, 0, 1, 1], [], []>} : vector<8x32xbf16>, vector<32x128xbf16>, vector<8x128xf32> -> vector<8x128xf32>
    %121 = arith.addf %118, %120 : vector<8x128xf32>
    %122 = arith.mulf %121, %8 : vector<8x128xf32>
    %123 = math.tanh %122 : vector<8x128xf32>
    %124 = arith.mulf %123, %8 : vector<8x128xf32>
    %125 = arith.addf %124, %11 : vector<8x128xf32>
    %126 = vector.extract_strided_slice %125 {offsets = [0, 0], sizes = [8, 32], strides = [1, 1]} : vector<8x128xf32> to vector<8x32xf32>
    %127 = vector.extract_strided_slice %125 {offsets = [0, 32], sizes = [8, 32], strides = [1, 1]} : vector<8x128xf32> to vector<8x32xf32>
    %128 = vector.extract_strided_slice %125 {offsets = [0, 64], sizes = [8, 32], strides = [1, 1]} : vector<8x128xf32> to vector<8x32xf32>
    %129 = vector.extract_strided_slice %125 {offsets = [0, 96], sizes = [8, 32], strides = [1, 1]} : vector<8x128xf32> to vector<8x32xf32>
    %130 = arith.mulf %127, %109 : vector<8x32xf32>
    %131 = arith.mulf %126, %128 : vector<8x32xf32>
    %132 = arith.addf %130, %131 : vector<8x32xf32>
    %133 = math.tanh %132 : vector<8x32xf32>
    %134 = arith.mulf %129, %133 : vector<8x32xf32>
    %135 = tpu.concatenate %134, %12 in 1 : vector<8x32xf32>, vector<8x96xf32> -> vector<8x128xf32>
    %136 = arith.index_cast %116 : i32 to index
    %c0_34 = arith.constant 0 : index
    %137 = vector.load %arg11[%136, %c0_34] : memref<64x128xf32, #tpu.memory_space<vmem>>, vector<8x128xf32>
    tpu.vector_store %arg11[%136, %c0_34], %135 {strides = array<i32>} : memref<64x128xf32, #tpu.memory_space<vmem>>, vector<8x128xf32>,
    %c5_i32 = arith.constant 5 : i32
    %c8_i32_35 = arith.constant 8 : i32
    %138 = arith.muli %c5_i32, %c8_i32_35 : i32
    %139 = tpu.assume_multiple %138, 8 : i32
    %140 = arith.index_cast %139 : i32 to index
    %c0_36 = arith.constant 0 : index
    %141 = vector.load %arg10[%140, %c0_36] : memref<64x128xf32, #tpu.memory_space<vmem>>, vector<8x128xf32>
    %142 = arith.truncf %134 : vector<8x32xf32> to vector<8x32xbf16>
    %cst_37 = arith.constant dense<0.000000e+00> : vector<8x128xf32>
    %143 = tpu.matmul %142, %20, %cst_37 {dimension_numbers = #tpu.dot_dimension_numbers<[1], [0], [0], [1], [0, 0, 1, 1], [], []>} : vector<8x32xbf16>, vector<32x128xbf16>, vector<8x128xf32> -> vector<8x128xf32>
    %144 = arith.addf %141, %143 : vector<8x128xf32>
    %145 = arith.mulf %144, %8 : vector<8x128xf32>
    %146 = math.tanh %145 : vector<8x128xf32>
    %147 = arith.mulf %146, %8 : vector<8x128xf32>
    %148 = arith.addf %147, %11 : vector<8x128xf32>
    %149 = vector.extract_strided_slice %148 {offsets = [0, 0], sizes = [8, 32], strides = [1, 1]} : vector<8x128xf32> to vector<8x32xf32>
    %150 = vector.extract_strided_slice %148 {offsets = [0, 32], sizes = [8, 32], strides = [1, 1]} : vector<8x128xf32> to vector<8x32xf32>
    %151 = vector.extract_strided_slice %148 {offsets = [0, 64], sizes = [8, 32], strides = [1, 1]} : vector<8x128xf32> to vector<8x32xf32>
    %152 = vector.extract_strided_slice %148 {offsets = [0, 96], sizes = [8, 32], strides = [1, 1]} : vector<8x128xf32> to vector<8x32xf32>
    %153 = arith.mulf %150, %132 : vector<8x32xf32>
    %154 = arith.mulf %149, %151 : vector<8x32xf32>
    %155 = arith.addf %153, %154 : vector<8x32xf32>
    %156 = math.tanh %155 : vector<8x32xf32>
    %157 = arith.mulf %152, %156 : vector<8x32xf32>
    %158 = tpu.concatenate %157, %12 in 1 : vector<8x32xf32>, vector<8x96xf32> -> vector<8x128xf32>
    %159 = arith.index_cast %139 : i32 to index
    %c0_38 = arith.constant 0 : index
    %160 = vector.load %arg11[%159, %c0_38] : memref<64x128xf32, #tpu.memory_space<vmem>>, vector<8x128xf32>
    tpu.vector_store %arg11[%159, %c0_38], %158 {strides = array<i32>} : memref<64x128xf32, #tpu.memory_space<vmem>>, vector<8x128xf32>,
    %c6_i32 = arith.constant 6 : i32
    %c8_i32_39 = arith.constant 8 : i32
    %161 = arith.muli %c6_i32, %c8_i32_39 : i32
    %162 = tpu.assume_multiple %161, 8 : i32
    %163 = arith.index_cast %162 : i32 to index
    %c0_40 = arith.constant 0 : index
    %164 = vector.load %arg10[%163, %c0_40] : memref<64x128xf32, #tpu.memory_space<vmem>>, vector<8x128xf32>
    %165 = arith.truncf %157 : vector<8x32xf32> to vector<8x32xbf16>
    %cst_41 = arith.constant dense<0.000000e+00> : vector<8x128xf32>
    %166 = tpu.matmul %165, %20, %cst_41 {dimension_numbers = #tpu.dot_dimension_numbers<[1], [0], [0], [1], [0, 0, 1, 1], [], []>} : vector<8x32xbf16>, vector<32x128xbf16>, vector<8x128xf32> -> vector<8x128xf32>
    %167 = arith.addf %164, %166 : vector<8x128xf32>
    %168 = arith.mulf %167, %8 : vector<8x128xf32>
    %169 = math.tanh %168 : vector<8x128xf32>
    %170 = arith.mulf %169, %8 : vector<8x128xf32>
    %171 = arith.addf %170, %11 : vector<8x128xf32>
    %172 = vector.extract_strided_slice %171 {offsets = [0, 0], sizes = [8, 32], strides = [1, 1]} : vector<8x128xf32> to vector<8x32xf32>
    %173 = vector.extract_strided_slice %171 {offsets = [0, 32], sizes = [8, 32], strides = [1, 1]} : vector<8x128xf32> to vector<8x32xf32>
    %174 = vector.extract_strided_slice %171 {offsets = [0, 64], sizes = [8, 32], strides = [1, 1]} : vector<8x128xf32> to vector<8x32xf32>
    %175 = vector.extract_strided_slice %171 {offsets = [0, 96], sizes = [8, 32], strides = [1, 1]} : vector<8x128xf32> to vector<8x32xf32>
    %176 = arith.mulf %173, %155 : vector<8x32xf32>
    %177 = arith.mulf %172, %174 : vector<8x32xf32>
    %178 = arith.addf %176, %177 : vector<8x32xf32>
    %179 = math.tanh %178 : vector<8x32xf32>
    %180 = arith.mulf %175, %179 : vector<8x32xf32>
    %181 = tpu.concatenate %180, %12 in 1 : vector<8x32xf32>, vector<8x96xf32> -> vector<8x128xf32>
    %182 = arith.index_cast %162 : i32 to index
    %c0_42 = arith.constant 0 : index
    %183 = vector.load %arg11[%182, %c0_42] : memref<64x128xf32, #tpu.memory_space<vmem>>, vector<8x128xf32>
    tpu.vector_store %arg11[%182, %c0_42], %181 {strides = array<i32>} : memref<64x128xf32, #tpu.memory_space<vmem>>, vector<8x128xf32>,
    %c7_i32 = arith.constant 7 : i32
    %c8_i32_43 = arith.constant 8 : i32
    %184 = arith.muli %c7_i32, %c8_i32_43 : i32
    %185 = tpu.assume_multiple %184, 8 : i32
    %186 = arith.index_cast %185 : i32 to index
    %c0_44 = arith.constant 0 : index
    %187 = vector.load %arg10[%186, %c0_44] : memref<64x128xf32, #tpu.memory_space<vmem>>, vector<8x128xf32>
    %188 = arith.truncf %180 : vector<8x32xf32> to vector<8x32xbf16>
    %cst_45 = arith.constant dense<0.000000e+00> : vector<8x128xf32>
    %189 = tpu.matmul %188, %20, %cst_45 {dimension_numbers = #tpu.dot_dimension_numbers<[1], [0], [0], [1], [0, 0, 1, 1], [], []>} : vector<8x32xbf16>, vector<32x128xbf16>, vector<8x128xf32> -> vector<8x128xf32>
    %190 = arith.addf %187, %189 : vector<8x128xf32>
    %191 = arith.mulf %190, %8 : vector<8x128xf32>
    %192 = math.tanh %191 : vector<8x128xf32>
    %193 = arith.mulf %192, %8 : vector<8x128xf32>
    %194 = arith.addf %193, %11 : vector<8x128xf32>
    %195 = vector.extract_strided_slice %194 {offsets = [0, 0], sizes = [8, 32], strides = [1, 1]} : vector<8x128xf32> to vector<8x32xf32>
    %196 = vector.extract_strided_slice %194 {offsets = [0, 32], sizes = [8, 32], strides = [1, 1]} : vector<8x128xf32> to vector<8x32xf32>
    %197 = vector.extract_strided_slice %194 {offsets = [0, 64], sizes = [8, 32], strides = [1, 1]} : vector<8x128xf32> to vector<8x32xf32>
    %198 = vector.extract_strided_slice %194 {offsets = [0, 96], sizes = [8, 32], strides = [1, 1]} : vector<8x128xf32> to vector<8x32xf32>
    %199 = arith.mulf %196, %178 : vector<8x32xf32>
    %200 = arith.mulf %195, %197 : vector<8x32xf32>
    %201 = arith.addf %199, %200 : vector<8x32xf32>
    %202 = math.tanh %201 : vector<8x32xf32>
    %203 = arith.mulf %198, %202 : vector<8x32xf32>
    %204 = tpu.concatenate %203, %12 in 1 : vector<8x32xf32>, vector<8x96xf32> -> vector<8x128xf32>
    %205 = arith.index_cast %185 : i32 to index
    %c0_46 = arith.constant 0 : index
    %206 = vector.load %arg11[%205, %c0_46] : memref<64x128xf32, #tpu.memory_space<vmem>>, vector<8x128xf32>
    tpu.vector_store %arg11[%205, %c0_46], %204 {strides = array<i32>} : memref<64x128xf32, #tpu.memory_space<vmem>>, vector<8x128xf32>,
    %c8_i32_47 = arith.constant 8 : i32
    %c0_48 = arith.constant 0 : index
    %c0_49 = arith.constant 0 : index
    %207 = vector.load %arg11[%c0_48, %c0_49] : memref<64x128xf32, #tpu.memory_space<vmem>>, vector<64x128xf32>
    %208 = arith.truncf %207 : vector<64x128xf32> to vector<64x128xbf16>
    %c0_50 = arith.constant 0 : index
    %c0_51 = arith.constant 0 : index
    %209 = vector.load %arg4[%c0_50, %c0_51] : memref<128x128xbf16, #tpu.memory_space<vmem>>, vector<128x128xbf16>
    %cst_52 = arith.constant dense<0.000000e+00> : vector<64x128xf32>
    %210 = tpu.matmul %208, %209, %cst_52 {dimension_numbers = #tpu.dot_dimension_numbers<[1], [0], [0], [1], [0, 0, 1, 1], [], []>} : vector<64x128xbf16>, vector<128x128xbf16>, vector<64x128xf32> -> vector<64x128xf32>
    %c0_53 = arith.constant 0 : index
    %c0_54 = arith.constant 0 : index
    %211 = vector.load %arg6[%c0_53, %c0_54] : memref<1x128xf32, #tpu.memory_space<vmem>>, vector<1x128xf32>
    %212 = vector.broadcast %211 : vector<1x128xf32> to vector<64x128xf32>
    %213 = arith.addf %210, %212 : vector<64x128xf32>
    %c0_55 = arith.constant 0 : index
    %c0_56 = arith.constant 0 : index
    %214 = vector.load %arg10[%c0_55, %c0_56] : memref<64x128xf32, #tpu.memory_space<vmem>>, vector<64x128xf32>
    tpu.vector_store %arg10[%c0_55, %c0_56], %213 {strides = array<i32>} : memref<64x128xf32, #tpu.memory_space<vmem>>, vector<64x128xf32>,
    %c0_57 = arith.constant 0 : index
    %c0_58 = arith.constant 0 : index
    %215 = vector.load %arg5[%c0_57, %c0_58] : memref<32x128xbf16, #tpu.memory_space<vmem>>, vector<32x128xbf16>
    %cst_59 = arith.constant 0.000000e+00 : f32
    %216 = vector.broadcast %cst_59 : f32 to vector<8x32xf32>
    %cst_60 = arith.constant 0.000000e+00 : f32
    %217 = vector.broadcast %cst_60 : f32 to vector<8x32xf32>
    %c0_i32_61 = arith.constant 0 : i32
    %c8_i32_62 = arith.constant 8 : i32
    %218 = arith.muli %c0_i32_61, %c8_i32_62 : i32
    %219 = tpu.assume_multiple %218, 8 : i32
    %220 = arith.index_cast %219 : i32 to index
    %c0_63 = arith.constant 0 : index
    %221 = vector.load %arg10[%220, %c0_63] : memref<64x128xf32, #tpu.memory_space<vmem>>, vector<8x128xf32>
    %222 = arith.truncf %216 : vector<8x32xf32> to vector<8x32xbf16>
    %cst_64 = arith.constant dense<0.000000e+00> : vector<8x128xf32>
    %223 = tpu.matmul %222, %215, %cst_64 {dimension_numbers = #tpu.dot_dimension_numbers<[1], [0], [0], [1], [0, 0, 1, 1], [], []>} : vector<8x32xbf16>, vector<32x128xbf16>, vector<8x128xf32> -> vector<8x128xf32>
    %224 = arith.addf %221, %223 : vector<8x128xf32>
    %225 = arith.mulf %224, %8 : vector<8x128xf32>
    %226 = math.tanh %225 : vector<8x128xf32>
    %227 = arith.mulf %226, %8 : vector<8x128xf32>
    %228 = arith.addf %227, %11 : vector<8x128xf32>
    %229 = vector.extract_strided_slice %228 {offsets = [0, 0], sizes = [8, 32], strides = [1, 1]} : vector<8x128xf32> to vector<8x32xf32>
    %230 = vector.extract_strided_slice %228 {offsets = [0, 32], sizes = [8, 32], strides = [1, 1]} : vector<8x128xf32> to vector<8x32xf32>
    %231 = vector.extract_strided_slice %228 {offsets = [0, 64], sizes = [8, 32], strides = [1, 1]} : vector<8x128xf32> to vector<8x32xf32>
    %232 = vector.extract_strided_slice %228 {offsets = [0, 96], sizes = [8, 32], strides = [1, 1]} : vector<8x128xf32> to vector<8x32xf32>
    %233 = arith.mulf %230, %217 : vector<8x32xf32>
    %234 = arith.mulf %229, %231 : vector<8x32xf32>
    %235 = arith.addf %233, %234 : vector<8x32xf32>
    %236 = math.tanh %235 : vector<8x32xf32>
    %237 = arith.mulf %232, %236 : vector<8x32xf32>
    %c1_i32_65 = arith.constant 1 : i32
    %c8_i32_66 = arith.constant 8 : i32
    %238 = arith.muli %c1_i32_65, %c8_i32_66 : i32
    %239 = tpu.assume_multiple %238, 8 : i32
    %240 = arith.index_cast %239 : i32 to index
    %c0_67 = arith.constant 0 : index
    %241 = vector.load %arg10[%240, %c0_67] : memref<64x128xf32, #tpu.memory_space<vmem>>, vector<8x128xf32>
    %242 = arith.truncf %237 : vector<8x32xf32> to vector<8x32xbf16>
    %cst_68 = arith.constant dense<0.000000e+00> : vector<8x128xf32>
    %243 = tpu.matmul %242, %215, %cst_68 {dimension_numbers = #tpu.dot_dimension_numbers<[1], [0], [0], [1], [0, 0, 1, 1], [], []>} : vector<8x32xbf16>, vector<32x128xbf16>, vector<8x128xf32> -> vector<8x128xf32>
    %244 = arith.addf %241, %243 : vector<8x128xf32>
    %245 = arith.mulf %244, %8 : vector<8x128xf32>
    %246 = math.tanh %245 : vector<8x128xf32>
    %247 = arith.mulf %246, %8 : vector<8x128xf32>
    %248 = arith.addf %247, %11 : vector<8x128xf32>
    %249 = vector.extract_strided_slice %248 {offsets = [0, 0], sizes = [8, 32], strides = [1, 1]} : vector<8x128xf32> to vector<8x32xf32>
    %250 = vector.extract_strided_slice %248 {offsets = [0, 32], sizes = [8, 32], strides = [1, 1]} : vector<8x128xf32> to vector<8x32xf32>
    %251 = vector.extract_strided_slice %248 {offsets = [0, 64], sizes = [8, 32], strides = [1, 1]} : vector<8x128xf32> to vector<8x32xf32>
    %252 = vector.extract_strided_slice %248 {offsets = [0, 96], sizes = [8, 32], strides = [1, 1]} : vector<8x128xf32> to vector<8x32xf32>
    %253 = arith.mulf %250, %235 : vector<8x32xf32>
    %254 = arith.mulf %249, %251 : vector<8x32xf32>
    %255 = arith.addf %253, %254 : vector<8x32xf32>
    %256 = math.tanh %255 : vector<8x32xf32>
    %257 = arith.mulf %252, %256 : vector<8x32xf32>
    %c2_i32_69 = arith.constant 2 : i32
    %c8_i32_70 = arith.constant 8 : i32
    %258 = arith.muli %c2_i32_69, %c8_i32_70 : i32
    %259 = tpu.assume_multiple %258, 8 : i32
    %260 = arith.index_cast %259 : i32 to index
    %c0_71 = arith.constant 0 : index
    %261 = vector.load %arg10[%260, %c0_71] : memref<64x128xf32, #tpu.memory_space<vmem>>, vector<8x128xf32>
    %262 = arith.truncf %257 : vector<8x32xf32> to vector<8x32xbf16>
    %cst_72 = arith.constant dense<0.000000e+00> : vector<8x128xf32>
    %263 = tpu.matmul %262, %215, %cst_72 {dimension_numbers = #tpu.dot_dimension_numbers<[1], [0], [0], [1], [0, 0, 1, 1], [], []>} : vector<8x32xbf16>, vector<32x128xbf16>, vector<8x128xf32> -> vector<8x128xf32>
    %264 = arith.addf %261, %263 : vector<8x128xf32>
    %265 = arith.mulf %264, %8 : vector<8x128xf32>
    %266 = math.tanh %265 : vector<8x128xf32>
    %267 = arith.mulf %266, %8 : vector<8x128xf32>
    %268 = arith.addf %267, %11 : vector<8x128xf32>
    %269 = vector.extract_strided_slice %268 {offsets = [0, 0], sizes = [8, 32], strides = [1, 1]} : vector<8x128xf32> to vector<8x32xf32>
    %270 = vector.extract_strided_slice %268 {offsets = [0, 32], sizes = [8, 32], strides = [1, 1]} : vector<8x128xf32> to vector<8x32xf32>
    %271 = vector.extract_strided_slice %268 {offsets = [0, 64], sizes = [8, 32], strides = [1, 1]} : vector<8x128xf32> to vector<8x32xf32>
    %272 = vector.extract_strided_slice %268 {offsets = [0, 96], sizes = [8, 32], strides = [1, 1]} : vector<8x128xf32> to vector<8x32xf32>
    %273 = arith.mulf %270, %255 : vector<8x32xf32>
    %274 = arith.mulf %269, %271 : vector<8x32xf32>
    %275 = arith.addf %273, %274 : vector<8x32xf32>
    %276 = math.tanh %275 : vector<8x32xf32>
    %277 = arith.mulf %272, %276 : vector<8x32xf32>
    %c3_i32_73 = arith.constant 3 : i32
    %c8_i32_74 = arith.constant 8 : i32
    %278 = arith.muli %c3_i32_73, %c8_i32_74 : i32
    %279 = tpu.assume_multiple %278, 8 : i32
    %280 = arith.index_cast %279 : i32 to index
    %c0_75 = arith.constant 0 : index
    %281 = vector.load %arg10[%280, %c0_75] : memref<64x128xf32, #tpu.memory_space<vmem>>, vector<8x128xf32>
    %282 = arith.truncf %277 : vector<8x32xf32> to vector<8x32xbf16>
    %cst_76 = arith.constant dense<0.000000e+00> : vector<8x128xf32>
    %283 = tpu.matmul %282, %215, %cst_76 {dimension_numbers = #tpu.dot_dimension_numbers<[1], [0], [0], [1], [0, 0, 1, 1], [], []>} : vector<8x32xbf16>, vector<32x128xbf16>, vector<8x128xf32> -> vector<8x128xf32>
    %284 = arith.addf %281, %283 : vector<8x128xf32>
    %285 = arith.mulf %284, %8 : vector<8x128xf32>
    %286 = math.tanh %285 : vector<8x128xf32>
    %287 = arith.mulf %286, %8 : vector<8x128xf32>
    %288 = arith.addf %287, %11 : vector<8x128xf32>
    %289 = vector.extract_strided_slice %288 {offsets = [0, 0], sizes = [8, 32], strides = [1, 1]} : vector<8x128xf32> to vector<8x32xf32>
    %290 = vector.extract_strided_slice %288 {offsets = [0, 32], sizes = [8, 32], strides = [1, 1]} : vector<8x128xf32> to vector<8x32xf32>
    %291 = vector.extract_strided_slice %288 {offsets = [0, 64], sizes = [8, 32], strides = [1, 1]} : vector<8x128xf32> to vector<8x32xf32>
    %292 = vector.extract_strided_slice %288 {offsets = [0, 96], sizes = [8, 32], strides = [1, 1]} : vector<8x128xf32> to vector<8x32xf32>
    %293 = arith.mulf %290, %275 : vector<8x32xf32>
    %294 = arith.mulf %289, %291 : vector<8x32xf32>
    %295 = arith.addf %293, %294 : vector<8x32xf32>
    %296 = math.tanh %295 : vector<8x32xf32>
    %297 = arith.mulf %292, %296 : vector<8x32xf32>
    %c4_i32_77 = arith.constant 4 : i32
    %c8_i32_78 = arith.constant 8 : i32
    %298 = arith.muli %c4_i32_77, %c8_i32_78 : i32
    %299 = tpu.assume_multiple %298, 8 : i32
    %300 = arith.index_cast %299 : i32 to index
    %c0_79 = arith.constant 0 : index
    %301 = vector.load %arg10[%300, %c0_79] : memref<64x128xf32, #tpu.memory_space<vmem>>, vector<8x128xf32>
    %302 = arith.truncf %297 : vector<8x32xf32> to vector<8x32xbf16>
    %cst_80 = arith.constant dense<0.000000e+00> : vector<8x128xf32>
    %303 = tpu.matmul %302, %215, %cst_80 {dimension_numbers = #tpu.dot_dimension_numbers<[1], [0], [0], [1], [0, 0, 1, 1], [], []>} : vector<8x32xbf16>, vector<32x128xbf16>, vector<8x128xf32> -> vector<8x128xf32>
    %304 = arith.addf %301, %303 : vector<8x128xf32>
    %305 = arith.mulf %304, %8 : vector<8x128xf32>
    %306 = math.tanh %305 : vector<8x128xf32>
    %307 = arith.mulf %306, %8 : vector<8x128xf32>
    %308 = arith.addf %307, %11 : vector<8x128xf32>
    %309 = vector.extract_strided_slice %308 {offsets = [0, 0], sizes = [8, 32], strides = [1, 1]} : vector<8x128xf32> to vector<8x32xf32>
    %310 = vector.extract_strided_slice %308 {offsets = [0, 32], sizes = [8, 32], strides = [1, 1]} : vector<8x128xf32> to vector<8x32xf32>
    %311 = vector.extract_strided_slice %308 {offsets = [0, 64], sizes = [8, 32], strides = [1, 1]} : vector<8x128xf32> to vector<8x32xf32>
    %312 = vector.extract_strided_slice %308 {offsets = [0, 96], sizes = [8, 32], strides = [1, 1]} : vector<8x128xf32> to vector<8x32xf32>
    %313 = arith.mulf %310, %295 : vector<8x32xf32>
    %314 = arith.mulf %309, %311 : vector<8x32xf32>
    %315 = arith.addf %313, %314 : vector<8x32xf32>
    %316 = math.tanh %315 : vector<8x32xf32>
    %317 = arith.mulf %312, %316 : vector<8x32xf32>
    %c5_i32_81 = arith.constant 5 : i32
    %c8_i32_82 = arith.constant 8 : i32
    %318 = arith.muli %c5_i32_81, %c8_i32_82 : i32
    %319 = tpu.assume_multiple %318, 8 : i32
    %320 = arith.index_cast %319 : i32 to index
    %c0_83 = arith.constant 0 : index
    %321 = vector.load %arg10[%320, %c0_83] : memref<64x128xf32, #tpu.memory_space<vmem>>, vector<8x128xf32>
    %322 = arith.truncf %317 : vector<8x32xf32> to vector<8x32xbf16>
    %cst_84 = arith.constant dense<0.000000e+00> : vector<8x128xf32>
    %323 = tpu.matmul %322, %215, %cst_84 {dimension_numbers = #tpu.dot_dimension_numbers<[1], [0], [0], [1], [0, 0, 1, 1], [], []>} : vector<8x32xbf16>, vector<32x128xbf16>, vector<8x128xf32> -> vector<8x128xf32>
    %324 = arith.addf %321, %323 : vector<8x128xf32>
    %325 = arith.mulf %324, %8 : vector<8x128xf32>
    %326 = math.tanh %325 : vector<8x128xf32>
    %327 = arith.mulf %326, %8 : vector<8x128xf32>
    %328 = arith.addf %327, %11 : vector<8x128xf32>
    %329 = vector.extract_strided_slice %328 {offsets = [0, 0], sizes = [8, 32], strides = [1, 1]} : vector<8x128xf32> to vector<8x32xf32>
    %330 = vector.extract_strided_slice %328 {offsets = [0, 32], sizes = [8, 32], strides = [1, 1]} : vector<8x128xf32> to vector<8x32xf32>
    %331 = vector.extract_strided_slice %328 {offsets = [0, 64], sizes = [8, 32], strides = [1, 1]} : vector<8x128xf32> to vector<8x32xf32>
    %332 = vector.extract_strided_slice %328 {offsets = [0, 96], sizes = [8, 32], strides = [1, 1]} : vector<8x128xf32> to vector<8x32xf32>
    %333 = arith.mulf %330, %315 : vector<8x32xf32>
    %334 = arith.mulf %329, %331 : vector<8x32xf32>
    %335 = arith.addf %333, %334 : vector<8x32xf32>
    %336 = math.tanh %335 : vector<8x32xf32>
    %337 = arith.mulf %332, %336 : vector<8x32xf32>
    %c6_i32_85 = arith.constant 6 : i32
    %c8_i32_86 = arith.constant 8 : i32
    %338 = arith.muli %c6_i32_85, %c8_i32_86 : i32
    %339 = tpu.assume_multiple %338, 8 : i32
    %340 = arith.index_cast %339 : i32 to index
    %c0_87 = arith.constant 0 : index
    %341 = vector.load %arg10[%340, %c0_87] : memref<64x128xf32, #tpu.memory_space<vmem>>, vector<8x128xf32>
    %342 = arith.truncf %337 : vector<8x32xf32> to vector<8x32xbf16>
    %cst_88 = arith.constant dense<0.000000e+00> : vector<8x128xf32>
    %343 = tpu.matmul %342, %215, %cst_88 {dimension_numbers = #tpu.dot_dimension_numbers<[1], [0], [0], [1], [0, 0, 1, 1], [], []>} : vector<8x32xbf16>, vector<32x128xbf16>, vector<8x128xf32> -> vector<8x128xf32>
    %344 = arith.addf %341, %343 : vector<8x128xf32>
    %345 = arith.mulf %344, %8 : vector<8x128xf32>
    %346 = math.tanh %345 : vector<8x128xf32>
    %347 = arith.mulf %346, %8 : vector<8x128xf32>
    %348 = arith.addf %347, %11 : vector<8x128xf32>
    %349 = vector.extract_strided_slice %348 {offsets = [0, 0], sizes = [8, 32], strides = [1, 1]} : vector<8x128xf32> to vector<8x32xf32>
    %350 = vector.extract_strided_slice %348 {offsets = [0, 32], sizes = [8, 32], strides = [1, 1]} : vector<8x128xf32> to vector<8x32xf32>
    %351 = vector.extract_strided_slice %348 {offsets = [0, 64], sizes = [8, 32], strides = [1, 1]} : vector<8x128xf32> to vector<8x32xf32>
    %352 = vector.extract_strided_slice %348 {offsets = [0, 96], sizes = [8, 32], strides = [1, 1]} : vector<8x128xf32> to vector<8x32xf32>
    %353 = arith.mulf %350, %335 : vector<8x32xf32>
    %354 = arith.mulf %349, %351 : vector<8x32xf32>
    %355 = arith.addf %353, %354 : vector<8x32xf32>
    %356 = math.tanh %355 : vector<8x32xf32>
    %357 = arith.mulf %352, %356 : vector<8x32xf32>
    %c7_i32_89 = arith.constant 7 : i32
    %c8_i32_90 = arith.constant 8 : i32
    %358 = arith.muli %c7_i32_89, %c8_i32_90 : i32
    %359 = tpu.assume_multiple %358, 8 : i32
    %360 = arith.index_cast %359 : i32 to index
    %c0_91 = arith.constant 0 : index
    %361 = vector.load %arg10[%360, %c0_91] : memref<64x128xf32, #tpu.memory_space<vmem>>, vector<8x128xf32>
    %362 = arith.truncf %357 : vector<8x32xf32> to vector<8x32xbf16>
    %cst_92 = arith.constant dense<0.000000e+00> : vector<8x128xf32>
    %363 = tpu.matmul %362, %215, %cst_92 {dimension_numbers = #tpu.dot_dimension_numbers<[1], [0], [0], [1], [0, 0, 1, 1], [], []>} : vector<8x32xbf16>, vector<32x128xbf16>, vector<8x128xf32> -> vector<8x128xf32>
    %364 = arith.addf %361, %363 : vector<8x128xf32>
    %365 = arith.mulf %364, %8 : vector<8x128xf32>
    %366 = math.tanh %365 : vector<8x128xf32>
    %367 = arith.mulf %366, %8 : vector<8x128xf32>
    %368 = arith.addf %367, %11 : vector<8x128xf32>
    %369 = vector.extract_strided_slice %368 {offsets = [0, 0], sizes = [8, 32], strides = [1, 1]} : vector<8x128xf32> to vector<8x32xf32>
    %370 = vector.extract_strided_slice %368 {offsets = [0, 32], sizes = [8, 32], strides = [1, 1]} : vector<8x128xf32> to vector<8x32xf32>
    %371 = vector.extract_strided_slice %368 {offsets = [0, 64], sizes = [8, 32], strides = [1, 1]} : vector<8x128xf32> to vector<8x32xf32>
    %372 = vector.extract_strided_slice %368 {offsets = [0, 96], sizes = [8, 32], strides = [1, 1]} : vector<8x128xf32> to vector<8x32xf32>
    %373 = arith.mulf %370, %355 : vector<8x32xf32>
    %374 = arith.mulf %369, %371 : vector<8x32xf32>
    %375 = arith.addf %373, %374 : vector<8x32xf32>
    %376 = math.tanh %375 : vector<8x32xf32>
    %377 = arith.mulf %372, %376 : vector<8x32xf32>
    %c8_i32_93 = arith.constant 8 : i32
    %c0_94 = arith.constant 0 : index
    %c0_95 = arith.constant 0 : index
    %378 = vector.load %arg7[%c0_94, %c0_95] : memref<32x128xf32, #tpu.memory_space<vmem>>, vector<32x128xf32>
    %cst_96 = arith.constant dense<0.000000e+00> : vector<8x128xf32>
    %379 = tpu.matmul %377, %378, %cst_96 {dimension_numbers = #tpu.dot_dimension_numbers<[1], [0], [0], [1], [0, 0, 1, 1], [], []>} : vector<8x32xf32>, vector<32x128xf32>, vector<8x128xf32> -> vector<8x128xf32>
    %c0_97 = arith.constant 0 : index
    %c0_98 = arith.constant 0 : index
    %380 = vector.load %arg8[%c0_97, %c0_98] : memref<1x128xf32, #tpu.memory_space<vmem>>, vector<1x128xf32>
    %381 = vector.broadcast %380 : vector<1x128xf32> to vector<8x128xf32>
    %382 = arith.addf %379, %381 : vector<8x128xf32>
    %c0_99 = arith.constant 0 : index
    %c0_100 = arith.constant 0 : index
    %383 = vector.load %arg9[%c0_99, %c0_100] : memref<8x128xf32, #tpu.memory_space<vmem>>, vector<8x128xf32>
    tpu.vector_store %arg9[%c0_99, %c0_100], %382 {strides = array<i32>} : memref<8x128xf32, #tpu.memory_space<vmem>>, vector<8x128xf32>,
    return
  }
}

</mosaic_0001>

<llo_original>
// kernel: multivariate_lstm_forward.1
$region0: #{multivariate_lstm_forward.1}
  #allocation0 [shape = 'u32[]', space=smem, size = 0x4, offset = 0x4, fixed_abs, tag = 'smem constant byte address 0x4 - core index']
  #allocation1 [shape = 'u32[144,128]{1,0:T(1,128)}', space=vmem, size = 0x12000, scoped, tag = 'internal scratch']
  #allocation2 [shape = 'f32[64,128]{1,0:T(8,128)}', space=vmem, size = 0x8000, scoped, tag = 'scratch operand']
  #allocation3 [shape = 'f32[64,128]{1,0:T(8,128)}', space=vmem, size = 0x8000, scoped, tag = 'scratch operand']
  %s0 = inlined_call_operand.vmem [shape: bf16[64,4], index: 0, kind: input, shape index: {}]
  %s1 = inlined_call_operand.vmem [shape: bf16[4,128], index: 1, kind: input, shape index: {}]
  %s2 = inlined_call_operand.vmem [shape: bf16[32,128], index: 2, kind: input, shape index: {}]
  %s3 = inlined_call_operand.vmem [shape: f32[1,128], index: 3, kind: input, shape index: {}]
  %s4 = inlined_call_operand.vmem [shape: bf16[128,128], index: 4, kind: input, shape index: {}]
  %s5 = inlined_call_operand.hbm [shape: bf16[32,128], index: 5, kind: input, shape index: {}]
  %s6 = inlined_call_operand.vmem [shape: f32[1,128], index: 6, kind: input, shape index: {}]
  %s7 = inlined_call_operand.hbm [shape: f32[32,128], index: 7, kind: input, shape index: {}]
  %s8 = inlined_call_operand.vmem [shape: f32[1,128], index: 8, kind: input, shape index: {}]
  %s9 = inlined_call_operand.vmem [shape: f32[8,128], index: 9, kind: output, shape index: {}]
  %s10 = sld [smem:[#allocation0]]
  $region54: #{multivariate_lstm_forward.1} parent=0
    _
  %s12 = ssub.s32 1, %s10
  %s13 = scalar_select 0, %s12, %s10
  $region1: #{multivariate_lstm_forward.1} parent=0
    #allocation4 [shape = 'u8[8192]{0}', space=vmem, size = 0x2000, scoped, tag = 'input window, operand 5, single buffered']
    #allocation5 [shape = 's32[1]{0}', space=sflag, size = 0x4, scoped, tag = 'scoped memory for multivariate_lstm_forward.1']
    #allocation6 [shape = 'u8[16384]{0}', space=vmem, size = 0x4000, scoped, tag = 'input window, operand 7, single buffered']
    #allocation7 [shape = 's32[1]{0}', space=sflag, size = 0x4, scoped, tag = 'scoped memory for multivariate_lstm_forward.1']
    %14 = vsyncpa [#allocation5], 0
    %15 = vsyncpa [#allocation7], 0
    // Predicated region
    $region2: #{multivariate_lstm_forward.1} parent=1 // pred_check
      _
    $region3: #{multivariate_lstm_forward.1} parent=1 // pred_check_branch
      %17 = sbr.rel (0) target = $region5
    $region4: #{multivariate_lstm_forward.1} parent=1 // pred_region
      _
    $region5: #{multivariate_lstm_forward.1} parent=1 // pred_fallthru
      _
    // Predicated region
    $region6: #{multivariate_lstm_forward.1} parent=1 // pred_check
      _
    $region7: #{multivariate_lstm_forward.1} parent=1 // pred_check_branch
      %19 = sbr.rel (0) target = $region9
    $region8: #{multivariate_lstm_forward.1} parent=1 // pred_region
      _
    $region9: #{multivariate_lstm_forward.1} parent=1 // pred_fallthru
      _
    // Predicated region
    $region10: #{multivariate_lstm_forward.1} parent=1 // pred_check
      _
    $region11: #{multivariate_lstm_forward.1} parent=1 // pred_check_branch
      %21 = sbr.rel (0) target = $region13
    $region12: #{multivariate_lstm_forward.1} parent=1 // pred_region
      _
    $region13: #{multivariate_lstm_forward.1} parent=1 // pred_fallthru
      _
    // Predicated region
    $region14: #{multivariate_lstm_forward.1} parent=1 // pred_check
      _
    $region15: #{multivariate_lstm_forward.1} parent=1 // pred_check_branch
      %23 = sbr.rel (0) target = $region17
    $region16: #{multivariate_lstm_forward.1} parent=1 // pred_region
      _
    $region17: #{multivariate_lstm_forward.1} parent=1 // pred_fallthru
      _
    // Predicated region
    $region18: #{multivariate_lstm_forward.1} parent=1 // pred_check
      _
    $region19: #{multivariate_lstm_forward.1} parent=1 // pred_check_branch
      %25 = sbr.rel (0) target = $region21
    $region20: #{multivariate_lstm_forward.1} parent=1 // pred_region
      _
    $region21: #{multivariate_lstm_forward.1} parent=1 // pred_fallthru
      _
    // Predicated region
    $region22: #{multivariate_lstm_forward.1} parent=1 // pred_check
      _
    $region23: #{multivariate_lstm_forward.1} parent=1 // pred_check_branch
      %27 = sbr.rel (0) target = $region25
    $region24: #{multivariate_lstm_forward.1} parent=1 // pred_region
      %s29 = ssub.s32 256, 256
      %30 = vsyncadd [#allocation5], %s29
      %s31 = sshll.u32 [#allocation4], 4
      %s32 = int_to_ptr.vmem [resolvable:$true] %s31
      %37 = dma.hbm_to_vmem [thread:$0]  %s5, 256, %s32, [#allocation5], 64, 64, 4
    $region25: #{multivariate_lstm_forward.1} parent=1 // pred_fallthru
      _
    // Predicated region
    $region26: #{multivariate_lstm_forward.1} parent=1 // pred_check
      _
    $region27: #{multivariate_lstm_forward.1} parent=1 // pred_check_branch
      %39 = sbr.rel (0) target = $region29
    $region28: #{multivariate_lstm_forward.1} parent=1 // pred_region
      _
    $region29: #{multivariate_lstm_forward.1} parent=1 // pred_fallthru
      _
    // Predicated region
    $region30: #{multivariate_lstm_forward.1} parent=1 // pred_check
      _
    $region31: #{multivariate_lstm_forward.1} parent=1 // pred_check_branch
      %41 = sbr.rel (0) target = $region33
    $region32: #{multivariate_lstm_forward.1} parent=1 // pred_region
      %s43 = ssub.s32 512, 512
      %44 = vsyncadd [#allocation7], %s43
      %s45 = sshll.u32 [#allocation6], 4
      %s46 = int_to_ptr.vmem [resolvable:$true] %s45
      %51 = dma.hbm_to_vmem [thread:$0]  %s7, 512, %s46, [#allocation7], 128, 128, 8
    $region33: #{multivariate_lstm_forward.1} parent=1 // pred_fallthru
      _
    // Predicated region
    $region34: #{multivariate_lstm_forward.1} parent=1 // pred_check
      _
    $region35: #{multivariate_lstm_forward.1} parent=1 // pred_check_branch
      %53 = sbr.rel (0) target = $region37
    $region36: #{multivariate_lstm_forward.1} parent=1 // pred_region
      _
    $region37: #{multivariate_lstm_forward.1} parent=1 // pred_fallthru
      _
    // Predicated region
    $region38: #{multivariate_lstm_forward.1} parent=1 // pred_check
      _
    $region39: #{multivariate_lstm_forward.1} parent=1 // pred_check_branch
      %55 = sbr.rel (0) target = $region41
    $region40: #{multivariate_lstm_forward.1} parent=1 // pred_region
      %56 = dma.done [#allocation5], 256
    $region41: #{multivariate_lstm_forward.1} parent=1 // pred_fallthru
      _
    // Predicated region
    $region42: #{multivariate_lstm_forward.1} parent=1 // pred_check
      _
    $region43: #{multivariate_lstm_forward.1} parent=1 // pred_check_branch
      %58 = sbr.rel (0) target = $region45
    $region44: #{multivariate_lstm_forward.1} parent=1 // pred_region
      %59 = dma.done [#allocation7], 512
    $region45: #{multivariate_lstm_forward.1} parent=1 // pred_fallthru
      _
    %v61 = vlaneseq
    %v62 = vand.u32 %v61, 127
    %vm63 = vcmp.ge.s32.totalorder %v62, 64
    %vm64 = vcmp.lt.s32.totalorder %v62, 96
    %vm65 = vmand %vm63, %vm64
    %v66 = vsel %vm65, 1.0, 0.5
    %v67 = vsel %vm65, 0.0, 0.5
    %v68 = vld [vmem:[%s0] sm:$0xf]
    %v69 = vld [vmem:[%s0 + $0x4] sm:$0xf]
    %v70 = vld [vmem:[%s0 + $0x8] sm:$0xf]
    %v71 = vld [vmem:[%s0 + $0xc] sm:$0xf]
    %v72 = vld [vmem:[%s0 + $0x10] sm:$0xf]
    %v73 = vld [vmem:[%s0 + $0x14] sm:$0xf]
    %v74 = vld [vmem:[%s0 + $0x18] sm:$0xf]
    %v75 = vld [vmem:[%s0 + $0x1c] sm:$0xf]
    %v76 = vld [vmem:[%s1] sm:$0x3]
    %v77 = vld [vmem:[%s3] sm:$0x1]
    %v79 = vlaneseq
    %v80 = vshrl.u32 %v79, 7
    %v81 = vsub.s32 0, %v80
    %v82 = vrot.slane %v77, %v81
    %v92 = vunpack.c.l.b16 %v68
    %v93 = vunpack.c.l.b16 %v69
    %v94 = vunpack.c.l.b16 %v70
    %v95 = vunpack.c.l.b16 %v71
    %v96 = vunpack.c.l.b16 %v72
    %v97 = vunpack.c.l.b16 %v73
    %v98 = vunpack.c.l.b16 %v74
    %v99 = vunpack.c.l.b16 %v75
    %v100 = vpack.c.b16 %v93, %v92
    %v101 = vpack.c.b16 %v95, %v94
    %v102 = vpack.c.b16 %v97, %v96
    %v103 = vpack.c.b16 %v99, %v98
    %vm104 = vcmask 31744
    %v106 = vsel %vm104, %v100, 0
    %v109 = vsel %vm104, %v101, 0
    %v112 = vsel %vm104, %v102, 0
    %v115 = vsel %vm104, %v103, 0
    %vm117 = vcmask 1041408
    %v119 = vsel %vm117, %v76, 0
    %121 = vmatprep.subr.bf16.mxu0 0
    %122 = vmatpush1.bf16.msra.mxu0 0
    %123 = vmatprep.subr.bf16.mxu0 0
    %124 = vmatpush1.bf16.msra.mxu0 0
    %125 = vmatprep.subr.bf16.mxu0 0
    %126 = vmatpush1.bf16.msra.mxu0 0
    %127 = vmatprep.subr.bf16.mxu0 0
    %128 = vmatpush1.bf16.msra.mxu0 0
    %129 = vmatprep.subr.bf16.mxu0 0
    %130 = vmatpush1.bf16.msra.mxu0 0
    %131 = vmatprep.subr.bf16.mxu0 0
    %132 = vmatpush1.bf16.msra.mxu0 0
    %133 = vmatprep.subr.bf16.mxu0 0
    %134 = vmatpush1.bf16.msra.mxu0 0
    %135 = vmatprep.subr.bf16.mxu0 0
    %136 = vmatpush1.bf16.msra.mxu0 %v119
    %137 = vmatprep.subr.bf16.mxu0 0
    %138 = vmatpush2.bf16.msra.mxu0 0
    %139 = vmatprep.subr.bf16.mxu0 0
    %140 = vmatpush2.bf16.msra.mxu0 0
    %141 = vmatprep.subr.bf16.mxu0 0
    %142 = vmatpush2.bf16.msra.mxu0 0
    %143 = vmatprep.subr.bf16.mxu0 0
    %144 = vmatpush2.bf16.msra.mxu0 0
    %145 = vmatprep.subr.bf16.mxu0 0
    %146 = vmatpush2.bf16.msra.mxu0 0
    %147 = vmatprep.subr.bf16.mxu0 0
    %148 = vmatpush2.bf16.msra.mxu0 0
    %149 = vmatprep.subr.bf16.mxu0 0
    %150 = vmatpush2.bf16.msra.mxu0 0
    %151 = vmatprep.subr.bf16.mxu0 0
    %152 = vmatpush2.bf16.msra.mxu0 0
    %153 = vmatprep.mubr.bf16.mxu0 0
    %154 = vmatmul.mubr.bf16.gmra.mxu0 %v106
    %v155 = vpop.f32.mrf.mxu0
    %v156 = vadd.f32 %v82, %v155
    %v157 = vpop.f32.mrf.mxu0
    %v158 = vpop.f32.mrf.mxu0
    %v159 = vadd.f32 %v82, %v158
    %v160 = vpop.f32.mrf.mxu0
    %161 = vmatprep.mubr.bf16.mxu0 0
    %162 = vmatmul.mubr.bf16.gmra.mxu0 %v109
    %v163 = vpop.f32.mrf.mxu0
    %v164 = vadd.f32 %v82, %v163
    %v165 = vpop.f32.mrf.mxu0
    %v166 = vpop.f32.mrf.mxu0
    %v167 = vadd.f32 %v82, %v166
    %v168 = vpop.f32.mrf.mxu0
    %169 = vmatprep.mubr.bf16.mxu0 0
    %170 = vmatmul.mubr.bf16.gmra.mxu0 %v112
    %v171 = vpop.f32.mrf.mxu0
    %v172 = vadd.f32 %v82, %v171
    %v173 = vpop.f32.mrf.mxu0
    %v174 = vpop.f32.mrf.mxu0
    %v175 = vadd.f32 %v82, %v174
    %v176 = vpop.f32.mrf.mxu0
    %177 = vmatprep.mubr.bf16.mxu0 0
    %178 = vmatmul.mubr.bf16.gmra.mxu0 %v115
    %v179 = vpop.f32.mrf.mxu0
    %v180 = vadd.f32 %v82, %v179
    %v181 = vpop.f32.mrf.mxu0
    %v182 = vpop.f32.mrf.mxu0
    %v183 = vadd.f32 %v82, %v182
    %v184 = vpop.f32.mrf.mxu0
    %185 = vdwg.mxu0
    %186 = vst [vmem:[#allocation2] sm:$0xff] %v156
    %187 = vst [vmem:[#allocation2 + $0x8] sm:$0xff] %v159
    %188 = vst [vmem:[#allocation2 + $0x10] sm:$0xff] %v164
    %189 = vst [vmem:[#allocation2 + $0x18] sm:$0xff] %v167
    %190 = vst [vmem:[#allocation2 + $0x20] sm:$0xff] %v172
    %191 = vst [vmem:[#allocation2 + $0x28] sm:$0xff] %v175
    %192 = vst [vmem:[#allocation2 + $0x30] sm:$0xff] %v180
    %193 = vst [vmem:[#allocation2 + $0x38] sm:$0xff] %v183
    %v194 = vld [vmem:[%s2] sm:$0xf]
    %v195 = vld [vmem:[%s2 + $0x4] sm:$0xf]
    %v196 = vld [vmem:[%s2 + $0x8] sm:$0xf]
    %v197 = vld [vmem:[%s2 + $0xc] sm:$0xf]
    %v198 = vld [vmem:[#allocation2] sm:$0xff]
    %v203 = vunpack.c.l.b16 %v194
    %v204 = vunpack.c.l.b16 %v195
    %v205 = vunpack.c.l.b16 %v196
    %v206 = vunpack.c.l.b16 %v197
    %v207 = vpack.c.b16 %v204, %v203
    %v208 = vpack.c.b16 %v206, %v205
    %vm211 = vcmask 261120
    %v213 = vsel %vm211, 0, 0
    %215 = vmatprep.subr.bf16.mxu0 0
    %216 = vmatpush1.bf16.msra.mxu0 0
    %217 = vmatprep.subr.bf16.mxu0 0
    %218 = vmatpush1.bf16.msra.mxu0 0
    %219 = vmatprep.subr.bf16.mxu0 0
    %220 = vmatpush1.bf16.msra.mxu0 0
    %221 = vmatprep.subr.bf16.mxu0 0
    %222 = vmatpush1.bf16.msra.mxu0 0
    %223 = vmatprep.subr.bf16.mxu0 0
    %224 = vmatpush1.bf16.msra.mxu0 0
    %225 = vmatprep.subr.bf16.mxu0 0
    %226 = vmatpush1.bf16.msra.mxu0 0
    %227 = vmatprep.subr.bf16.mxu0 0
    %228 = vmatpush1.bf16.msra.mxu0 %v208
    %229 = vmatprep.subr.bf16.mxu0 0
    %230 = vmatpush1.bf16.msra.mxu0 %v207
    %231 = vmatprep.subr.bf16.mxu0 0
    %232 = vmatpush2.bf16.msra.mxu0 0
    %233 = vmatprep.subr.bf16.mxu0 0
    %234 = vmatpush2.bf16.msra.mxu0 0
    %235 = vmatprep.subr.bf16.mxu0 0
    %236 = vmatpush2.bf16.msra.mxu0 0
    %237 = vmatprep.subr.bf16.mxu0 0
    %238 = vmatpush2.bf16.msra.mxu0 0
    %239 = vmatprep.subr.bf16.mxu0 0
    %240 = vmatpush2.bf16.msra.mxu0 0
    %241 = vmatprep.subr.bf16.mxu0 0
    %242 = vmatpush2.bf16.msra.mxu0 0
    %243 = vmatprep.subr.bf16.mxu0 0
    %244 = vmatpush2.bf16.msra.mxu0 0
    %245 = vmatprep.subr.bf16.mxu0 0
    %246 = vmatpush2.bf16.msra.mxu0 0
    %247 = vmatprep.mubr.bf16.mxu0 0
    %248 = vmatmul.mubr.bf16.gmra.mxu0 %v213
    %v249 = vpop.f32.mrf.mxu0
    %v250 = vadd.f32 0.0, %v249
    %v251 = vpop.f32.mrf.mxu0
    %v252 = vpop.f32.mrf.mxu0
    %v253 = vpop.f32.mrf.mxu0
    %254 = vdwg.mxu0
    %v255 = vadd.f32 %v198, %v250
    %v256 = vmul.f32 %v255, %v66
    %v257 = vtanh.pop %v256
    %v258 = vmul.f32 %v257, %v66
    %v259 = vadd.f32 %v258, %v67
    %v260 = vmul.f32 %v259, 0.0
    %262 = vrot.lane.b32.xlu0 %v259, 64
    %v263 = vpop.permute.xlu0 %262
    %v265 = vmul.f32 %v259, %v263
    %267 = vrot.lane.b32.xlu0 %v265, 32
    %v268 = vpop.permute.xlu0 %267
    %v270 = vadd.f32 %v260, %v268
    %v271 = vtanh.pop %v270
    %273 = vrot.lane.b32.xlu0 %v271, 64
    %v274 = vpop.permute.xlu0 %273
    %v276 = vmul.f32 %v259, %v274
    %278 = vrot.lane.b32.xlu0 %v276, 32
    %v279 = vpop.permute.xlu0 %278
    %v281 = vsel %vm211, %v279, 0.0
    %282 = vst [vmem:[#allocation3] sm:$0xff] %v281
    %s283 = scalar_lea.vmem [#allocation2], 8
    %v284 = vld [vmem:[%s283] sm:$0xff]
    %v285 = vpack.c.bf16 %v276, %v276
    %287 = vrot.lane.b32.xlu0 %v285, 32
    %v288 = vpop.permute.xlu0 %287
    %v290 = vsel %vm211, %v288, 0
    %292 = vmatprep.subr.bf16.mxu0 0
    %293 = vmatpush1.bf16.msra.mxu0 0
    %294 = vmatprep.subr.bf16.mxu0 0
    %295 = vmatpush1.bf16.msra.mxu0 0
    %296 = vmatprep.subr.bf16.mxu0 0
    %297 = vmatpush1.bf16.msra.mxu0 0
    %298 = vmatprep.subr.bf16.mxu0 0
    %299 = vmatpush1.bf16.msra.mxu0 0
    %300 = vmatprep.subr.bf16.mxu0 0
    %301 = vmatpush1.bf16.msra.mxu0 0
    %302 = vmatprep.subr.bf16.mxu0 0
    %303 = vmatpush1.bf16.msra.mxu0 0
    %304 = vmatprep.subr.bf16.mxu0 0
    %305 = vmatpush1.bf16.msra.mxu0 %v208
    %306 = vmatprep.subr.bf16.mxu0 0
    %307 = vmatpush1.bf16.msra.mxu0 %v207
    %308 = vmatprep.subr.bf16.mxu0 0
    %309 = vmatpush2.bf16.msra.mxu0 0
    %310 = vmatprep.subr.bf16.mxu0 0
    %311 = vmatpush2.bf16.msra.mxu0 0
    %312 = vmatprep.subr.bf16.mxu0 0
    %313 = vmatpush2.bf16.msra.mxu0 0
    %314 = vmatprep.subr.bf16.mxu0 0
    %315 = vmatpush2.bf16.msra.mxu0 0
    %316 = vmatprep.subr.bf16.mxu0 0
    %317 = vmatpush2.bf16.msra.mxu0 0
    %318 = vmatprep.subr.bf16.mxu0 0
    %319 = vmatpush2.bf16.msra.mxu0 0
    %320 = vmatprep.subr.bf16.mxu0 0
    %321 = vmatpush2.bf16.msra.mxu0 0
    %322 = vmatprep.subr.bf16.mxu0 0
    %323 = vmatpush2.bf16.msra.mxu0 0
    %324 = vmatprep.mubr.bf16.mxu0 0
    %325 = vmatmul.mubr.bf16.gmra.mxu0 %v290
    %v326 = vpop.f32.mrf.mxu0
    %v327 = vadd.f32 0.0, %v326
    %v328 = vpop.f32.mrf.mxu0
    %v329 = vpop.f32.mrf.mxu0
    %v330 = vpop.f32.mrf.mxu0
    %331 = vdwg.mxu0
    %v332 = vadd.f32 %v284, %v327
    %v333 = vmul.f32 %v332, %v66
    %v334 = vtanh.pop %v333
    %v335 = vmul.f32 %v334, %v66
    %v336 = vadd.f32 %v335, %v67
    %v337 = vmul.f32 %v336, %v270
    %339 = vrot.lane.b32.xlu0 %v336, 64
    %v340 = vpop.permute.xlu0 %339
    %v342 = vmul.f32 %v336, %v340
    %344 = vrot.lane.b32.xlu0 %v342, 32
    %v345 = vpop.permute.xlu0 %344
    %v347 = vadd.f32 %v337, %v345
    %v348 = vtanh.pop %v347
    %350 = vrot.lane.b32.xlu0 %v348, 64
    %v351 = vpop.permute.xlu0 %350
    %v353 = vmul.f32 %v336, %v351
    %355 = vrot.lane.b32.xlu0 %v353, 32
    %v356 = vpop.permute.xlu0 %355
    %v358 = vsel %vm211, %v356, 0.0
    %s359 = scalar_lea.vmem [#allocation3], 8
    %360 = vst [vmem:[%s359] sm:$0xff] %v358
    %s361 = scalar_lea.vmem [#allocation2], 16
    %v362 = vld [vmem:[%s361] sm:$0xff]
    %v363 = vpack.c.bf16 %v353, %v353
    %365 = vrot.lane.b32.xlu0 %v363, 32
    %v366 = vpop.permute.xlu0 %365
    %v368 = vsel %vm211, %v366, 0
    %370 = vmatprep.subr.bf16.mxu0 0
    %371 = vmatpush1.bf16.msra.mxu0 0
    %372 = vmatprep.subr.bf16.mxu0 0
    %373 = vmatpush1.bf16.msra.mxu0 0
    %374 = vmatprep.subr.bf16.mxu0 0
    %375 = vmatpush1.bf16.msra.mxu0 0
    %376 = vmatprep.subr.bf16.mxu0 0
    %377 = vmatpush1.bf16.msra.mxu0 0
    %378 = vmatprep.subr.bf16.mxu0 0
    %379 = vmatpush1.bf16.msra.mxu0 0
    %380 = vmatprep.subr.bf16.mxu0 0
    %381 = vmatpush1.bf16.msra.mxu0 0
    %382 = vmatprep.subr.bf16.mxu0 0
    %383 = vmatpush1.bf16.msra.mxu0 %v208
    %384 = vmatprep.subr.bf16.mxu0 0
    %385 = vmatpush1.bf16.msra.mxu0 %v207
    %386 = vmatprep.subr.bf16.mxu0 0
    %387 = vmatpush2.bf16.msra.mxu0 0
    %388 = vmatprep.subr.bf16.mxu0 0
    %389 = vmatpush2.bf16.msra.mxu0 0
    %390 = vmatprep.subr.bf16.mxu0 0
    %391 = vmatpush2.bf16.msra.mxu0 0
    %392 = vmatprep.subr.bf16.mxu0 0
    %393 = vmatpush2.bf16.msra.mxu0 0
    %394 = vmatprep.subr.bf16.mxu0 0
    %395 = vmatpush2.bf16.msra.mxu0 0
    %396 = vmatprep.subr.bf16.mxu0 0
    %397 = vmatpush2.bf16.msra.mxu0 0
    %398 = vmatprep.subr.bf16.mxu0 0
    %399 = vmatpush2.bf16.msra.mxu0 0
    %400 = vmatprep.subr.bf16.mxu0 0
    %401 = vmatpush2.bf16.msra.mxu0 0
    %402 = vmatprep.mubr.bf16.mxu0 0
    %403 = vmatmul.mubr.bf16.gmra.mxu0 %v368
    %v404 = vpop.f32.mrf.mxu0
    %v405 = vadd.f32 0.0, %v404
    %v406 = vpop.f32.mrf.mxu0
    %v407 = vpop.f32.mrf.mxu0
    %v408 = vpop.f32.mrf.mxu0
    %409 = vdwg.mxu0
    %v410 = vadd.f32 %v362, %v405
    %v411 = vmul.f32 %v410, %v66
    %v412 = vtanh.pop %v411
    %v413 = vmul.f32 %v412, %v66
    %v414 = vadd.f32 %v413, %v67
    %v415 = vmul.f32 %v414, %v347
    %417 = vrot.lane.b32.xlu0 %v414, 64
    %v418 = vpop.permute.xlu0 %417
    %v420 = vmul.f32 %v414, %v418
    %422 = vrot.lane.b32.xlu0 %v420, 32
    %v423 = vpop.permute.xlu0 %422
    %v425 = vadd.f32 %v415, %v423
    %v426 = vtanh.pop %v425
    %428 = vrot.lane.b32.xlu0 %v426, 64
    %v429 = vpop.permute.xlu0 %428
    %v431 = vmul.f32 %v414, %v429
    %433 = vrot.lane.b32.xlu0 %v431, 32
    %v434 = vpop.permute.xlu0 %433
    %v436 = vsel %vm211, %v434, 0.0
    %s437 = scalar_lea.vmem [#allocation3], 16
    %438 = vst [vmem:[%s437] sm:$0xff] %v436
    %s439 = scalar_lea.vmem [#allocation2], 24
    %v440 = vld [vmem:[%s439] sm:$0xff]
    %v441 = vpack.c.bf16 %v431, %v431
    %443 = vrot.lane.b32.xlu0 %v441, 32
    %v444 = vpop.permute.xlu0 %443
    %v446 = vsel %vm211, %v444, 0
    %448 = vmatprep.subr.bf16.mxu0 0
    %449 = vmatpush1.bf16.msra.mxu0 0
    %450 = vmatprep.subr.bf16.mxu0 0
    %451 = vmatpush1.bf16.msra.mxu0 0
    %452 = vmatprep.subr.bf16.mxu0 0
    %453 = vmatpush1.bf16.msra.mxu0 0
    %454 = vmatprep.subr.bf16.mxu0 0
    %455 = vmatpush1.bf16.msra.mxu0 0
    %456 = vmatprep.subr.bf16.mxu0 0
    %457 = vmatpush1.bf16.msra.mxu0 0
    %458 = vmatprep.subr.bf16.mxu0 0
    %459 = vmatpush1.bf16.msra.mxu0 0
    %460 = vmatprep.subr.bf16.mxu0 0
    %461 = vmatpush1.bf16.msra.mxu0 %v208
    %462 = vmatprep.subr.bf16.mxu0 0
    %463 = vmatpush1.bf16.msra.mxu0 %v207
    %464 = vmatprep.subr.bf16.mxu0 0
    %465 = vmatpush2.bf16.msra.mxu0 0
    %466 = vmatprep.subr.bf16.mxu0 0
    %467 = vmatpush2.bf16.msra.mxu0 0
    %468 = vmatprep.subr.bf16.mxu0 0
    %469 = vmatpush2.bf16.msra.mxu0 0
    %470 = vmatprep.subr.bf16.mxu0 0
    %471 = vmatpush2.bf16.msra.mxu0 0
    %472 = vmatprep.subr.bf16.mxu0 0
    %473 = vmatpush2.bf16.msra.mxu0 0
    %474 = vmatprep.subr.bf16.mxu0 0
    %475 = vmatpush2.bf16.msra.mxu0 0
    %476 = vmatprep.subr.bf16.mxu0 0
    %477 = vmatpush2.bf16.msra.mxu0 0
    %478 = vmatprep.subr.bf16.mxu0 0
    %479 = vmatpush2.bf16.msra.mxu0 0
    %480 = vmatprep.mubr.bf16.mxu0 0
    %481 = vmatmul.mubr.bf16.gmra.mxu0 %v446
    %v482 = vpop.f32.mrf.mxu0
    %v483 = vadd.f32 0.0, %v482
    %v484 = vpop.f32.mrf.mxu0
    %v485 = vpop.f32.mrf.mxu0
    %v486 = vpop.f32.mrf.mxu0
    %487 = vdwg.mxu0
    %v488 = vadd.f32 %v440, %v483
    %v489 = vmul.f32 %v488, %v66
    %v490 = vtanh.pop %v489
    %v491 = vmul.f32 %v490, %v66
    %v492 = vadd.f32 %v491, %v67
    %v493 = vmul.f32 %v492, %v425
    %495 = vrot.lane.b32.xlu0 %v492, 64
    %v496 = vpop.permute.xlu0 %495
    %v498 = vmul.f32 %v492, %v496
    %500 = vrot.lane.b32.xlu0 %v498, 32
    %v501 = vpop.permute.xlu0 %500
    %v503 = vadd.f32 %v493, %v501
    %v504 = vtanh.pop %v503
    %506 = vrot.lane.b32.xlu0 %v504, 64
    %v507 = vpop.permute.xlu0 %506
    %v509 = vmul.f32 %v492, %v507
    %511 = vrot.lane.b32.xlu0 %v509, 32
    %v512 = vpop.permute.xlu0 %511
    %v514 = vsel %vm211, %v512, 0.0
    %s515 = scalar_lea.vmem [#allocation3], 24
    %516 = vst [vmem:[%s515] sm:$0xff] %v514
    %s517 = scalar_lea.vmem [#allocation2], 32
    %v518 = vld [vmem:[%s517] sm:$0xff]
    %v519 = vpack.c.bf16 %v509, %v509
    %521 = vrot.lane.b32.xlu0 %v519, 32
    %v522 = vpop.permute.xlu0 %521
    %v524 = vsel %vm211, %v522, 0
    %526 = vmatprep.subr.bf16.mxu0 0
    %527 = vmatpush1.bf16.msra.mxu0 0
    %528 = vmatprep.subr.bf16.mxu0 0
    %529 = vmatpush1.bf16.msra.mxu0 0
    %530 = vmatprep.subr.bf16.mxu0 0
    %531 = vmatpush1.bf16.msra.mxu0 0
    %532 = vmatprep.subr.bf16.mxu0 0
    %533 = vmatpush1.bf16.msra.mxu0 0
    %534 = vmatprep.subr.bf16.mxu0 0
    %535 = vmatpush1.bf16.msra.mxu0 0
    %536 = vmatprep.subr.bf16.mxu0 0
    %537 = vmatpush1.bf16.msra.mxu0 0
    %538 = vmatprep.subr.bf16.mxu0 0
    %539 = vmatpush1.bf16.msra.mxu0 %v208
    %540 = vmatprep.subr.bf16.mxu0 0
    %541 = vmatpush1.bf16.msra.mxu0 %v207
    %542 = vmatprep.subr.bf16.mxu0 0
    %543 = vmatpush2.bf16.msra.mxu0 0
    %544 = vmatprep.subr.bf16.mxu0 0
    %545 = vmatpush2.bf16.msra.mxu0 0
    %546 = vmatprep.subr.bf16.mxu0 0
    %547 = vmatpush2.bf16.msra.mxu0 0
    %548 = vmatprep.subr.bf16.mxu0 0
    %549 = vmatpush2.bf16.msra.mxu0 0
    %550 = vmatprep.subr.bf16.mxu0 0
    %551 = vmatpush2.bf16.msra.mxu0 0
    %552 = vmatprep.subr.bf16.mxu0 0
    %553 = vmatpush2.bf16.msra.mxu0 0
    %554 = vmatprep.subr.bf16.mxu0 0
    %555 = vmatpush2.bf16.msra.mxu0 0
    %556 = vmatprep.subr.bf16.mxu0 0
    %557 = vmatpush2.bf16.msra.mxu0 0
    %558 = vmatprep.mubr.bf16.mxu0 0
    %559 = vmatmul.mubr.bf16.gmra.mxu0 %v524
    %v560 = vpop.f32.mrf.mxu0
    %v561 = vadd.f32 0.0, %v560
    %v562 = vpop.f32.mrf.mxu0
    %v563 = vpop.f32.mrf.mxu0
    %v564 = vpop.f32.mrf.mxu0
    %565 = vdwg.mxu0
    %v566 = vadd.f32 %v518, %v561
    %v567 = vmul.f32 %v566, %v66
    %v568 = vtanh.pop %v567
    %v569 = vmul.f32 %v568, %v66
    %v570 = vadd.f32 %v569, %v67
    %v571 = vmul.f32 %v570, %v503
    %573 = vrot.lane.b32.xlu0 %v570, 64
    %v574 = vpop.permute.xlu0 %573
    %v576 = vmul.f32 %v570, %v574
    %578 = vrot.lane.b32.xlu0 %v576, 32
    %v579 = vpop.permute.xlu0 %578
    %v581 = vadd.f32 %v571, %v579
    %v582 = vtanh.pop %v581
    %584 = vrot.lane.b32.xlu0 %v582, 64
    %v585 = vpop.permute.xlu0 %584
    %v587 = vmul.f32 %v570, %v585
    %589 = vrot.lane.b32.xlu0 %v587, 32
    %v590 = vpop.permute.xlu0 %589
    %v592 = vsel %vm211, %v590, 0.0
    %s593 = scalar_lea.vmem [#allocation3], 32
    %594 = vst [vmem:[%s593] sm:$0xff] %v592
    %s595 = scalar_lea.vmem [#allocation2], 40
    %v596 = vld [vmem:[%s595] sm:$0xff]
    %v597 = vpack.c.bf16 %v587, %v587
    %599 = vrot.lane.b32.xlu0 %v597, 32
    %v600 = vpop.permute.xlu0 %599
    %v602 = vsel %vm211, %v600, 0
    %604 = vmatprep.subr.bf16.mxu0 0
    %605 = vmatpush1.bf16.msra.mxu0 0
    %606 = vmatprep.subr.bf16.mxu0 0
    %607 = vmatpush1.bf16.msra.mxu0 0
    %608 = vmatprep.subr.bf16.mxu0 0
    %609 = vmatpush1.bf16.msra.mxu0 0
    %610 = vmatprep.subr.bf16.mxu0 0
    %611 = vmatpush1.bf16.msra.mxu0 0
    %612 = vmatprep.subr.bf16.mxu0 0
    %613 = vmatpush1.bf16.msra.mxu0 0
    %614 = vmatprep.subr.bf16.mxu0 0
    %615 = vmatpush1.bf16.msra.mxu0 0
    %616 = vmatprep.subr.bf16.mxu0 0
    %617 = vmatpush1.bf16.msra.mxu0 %v208
    %618 = vmatprep.subr.bf16.mxu0 0
    %619 = vmatpush1.bf16.msra.mxu0 %v207
    %620 = vmatprep.subr.bf16.mxu0 0
    %621 = vmatpush2.bf16.msra.mxu0 0
    %622 = vmatprep.subr.bf16.mxu0 0
    %623 = vmatpush2.bf16.msra.mxu0 0
    %624 = vmatprep.subr.bf16.mxu0 0
    %625 = vmatpush2.bf16.msra.mxu0 0
    %626 = vmatprep.subr.bf16.mxu0 0
    %627 = vmatpush2.bf16.msra.mxu0 0
    %628 = vmatprep.subr.bf16.mxu0 0
    %629 = vmatpush2.bf16.msra.mxu0 0
    %630 = vmatprep.subr.bf16.mxu0 0
    %631 = vmatpush2.bf16.msra.mxu0 0
    %632 = vmatprep.subr.bf16.mxu0 0
    %633 = vmatpush2.bf16.msra.mxu0 0
    %634 = vmatprep.subr.bf16.mxu0 0
    %635 = vmatpush2.bf16.msra.mxu0 0
    %636 = vmatprep.mubr.bf16.mxu0 0
    %637 = vmatmul.mubr.bf16.gmra.mxu0 %v602
    %v638 = vpop.f32.mrf.mxu0
    %v639 = vadd.f32 0.0, %v638
    %v640 = vpop.f32.mrf.mxu0
    %v641 = vpop.f32.mrf.mxu0
    %v642 = vpop.f32.mrf.mxu0
    %643 = vdwg.mxu0
    %v644 = vadd.f32 %v596, %v639
    %v645 = vmul.f32 %v644, %v66
    %v646 = vtanh.pop %v645
    %v647 = vmul.f32 %v646, %v66
    %v648 = vadd.f32 %v647, %v67
    %v649 = vmul.f32 %v648, %v581
    %651 = vrot.lane.b32.xlu0 %v648, 64
    %v652 = vpop.permute.xlu0 %651
    %v654 = vmul.f32 %v648, %v652
    %656 = vrot.lane.b32.xlu0 %v654, 32
    %v657 = vpop.permute.xlu0 %656
    %v659 = vadd.f32 %v649, %v657
    %v660 = vtanh.pop %v659
    %662 = vrot.lane.b32.xlu0 %v660, 64
    %v663 = vpop.permute.xlu0 %662
    %v665 = vmul.f32 %v648, %v663
    %667 = vrot.lane.b32.xlu0 %v665, 32
    %v668 = vpop.permute.xlu0 %667
    %v670 = vsel %vm211, %v668, 0.0
    %s671 = scalar_lea.vmem [#allocation3], 40
    %672 = vst [vmem:[%s671] sm:$0xff] %v670
    %s673 = scalar_lea.vmem [#allocation2], 48
    %v674 = vld [vmem:[%s673] sm:$0xff]
    %v675 = vpack.c.bf16 %v665, %v665
    %677 = vrot.lane.b32.xlu0 %v675, 32
    %v678 = vpop.permute.xlu0 %677
    %v680 = vsel %vm211, %v678, 0
    %682 = vmatprep.subr.bf16.mxu0 0
    %683 = vmatpush1.bf16.msra.mxu0 0
    %684 = vmatprep.subr.bf16.mxu0 0
    %685 = vmatpush1.bf16.msra.mxu0 0
    %686 = vmatprep.subr.bf16.mxu0 0
    %687 = vmatpush1.bf16.msra.mxu0 0
    %688 = vmatprep.subr.bf16.mxu0 0
    %689 = vmatpush1.bf16.msra.mxu0 0
    %690 = vmatprep.subr.bf16.mxu0 0
    %691 = vmatpush1.bf16.msra.mxu0 0
    %692 = vmatprep.subr.bf16.mxu0 0
    %693 = vmatpush1.bf16.msra.mxu0 0
    %694 = vmatprep.subr.bf16.mxu0 0
    %695 = vmatpush1.bf16.msra.mxu0 %v208
    %696 = vmatprep.subr.bf16.mxu0 0
    %697 = vmatpush1.bf16.msra.mxu0 %v207
    %698 = vmatprep.subr.bf16.mxu0 0
    %699 = vmatpush2.bf16.msra.mxu0 0
    %700 = vmatprep.subr.bf16.mxu0 0
    %701 = vmatpush2.bf16.msra.mxu0 0
    %702 = vmatprep.subr.bf16.mxu0 0
    %703 = vmatpush2.bf16.msra.mxu0 0
    %704 = vmatprep.subr.bf16.mxu0 0
    %705 = vmatpush2.bf16.msra.mxu0 0
    %706 = vmatprep.subr.bf16.mxu0 0
    %707 = vmatpush2.bf16.msra.mxu0 0
    %708 = vmatprep.subr.bf16.mxu0 0
    %709 = vmatpush2.bf16.msra.mxu0 0
    %710 = vmatprep.subr.bf16.mxu0 0
    %711 = vmatpush2.bf16.msra.mxu0 0
    %712 = vmatprep.subr.bf16.mxu0 0
    %713 = vmatpush2.bf16.msra.mxu0 0
    %714 = vmatprep.mubr.bf16.mxu0 0
    %715 = vmatmul.mubr.bf16.gmra.mxu0 %v680
    %v716 = vpop.f32.mrf.mxu0
    %v717 = vadd.f32 0.0, %v716
    %v718 = vpop.f32.mrf.mxu0
    %v719 = vpop.f32.mrf.mxu0
    %v720 = vpop.f32.mrf.mxu0
    %721 = vdwg.mxu0
    %v722 = vadd.f32 %v674, %v717
    %v723 = vmul.f32 %v722, %v66
    %v724 = vtanh.pop %v723
    %v725 = vmul.f32 %v724, %v66
    %v726 = vadd.f32 %v725, %v67
    %v727 = vmul.f32 %v726, %v659
    %729 = vrot.lane.b32.xlu0 %v726, 64
    %v730 = vpop.permute.xlu0 %729
    %v732 = vmul.f32 %v726, %v730
    %734 = vrot.lane.b32.xlu0 %v732, 32
    %v735 = vpop.permute.xlu0 %734
    %v737 = vadd.f32 %v727, %v735
    %v738 = vtanh.pop %v737
    %740 = vrot.lane.b32.xlu0 %v738, 64
    %v741 = vpop.permute.xlu0 %740
    %v743 = vmul.f32 %v726, %v741
    %745 = vrot.lane.b32.xlu0 %v743, 32
    %v746 = vpop.permute.xlu0 %745
    %v748 = vsel %vm211, %v746, 0.0
    %s749 = scalar_lea.vmem [#allocation3], 48
    %750 = vst [vmem:[%s749] sm:$0xff] %v748
    %s751 = scalar_lea.vmem [#allocation2], 56
    %v752 = vld [vmem:[%s751] sm:$0xff]
    %v753 = vpack.c.bf16 %v743, %v743
    %755 = vrot.lane.b32.xlu0 %v753, 32
    %v756 = vpop.permute.xlu0 %755
    %v758 = vsel %vm211, %v756, 0
    %760 = vmatprep.subr.bf16.mxu0 0
    %761 = vmatpush1.bf16.msra.mxu0 0
    %762 = vmatprep.subr.bf16.mxu0 0
    %763 = vmatpush1.bf16.msra.mxu0 0
    %764 = vmatprep.subr.bf16.mxu0 0
    %765 = vmatpush1.bf16.msra.mxu0 0
    %766 = vmatprep.subr.bf16.mxu0 0
    %767 = vmatpush1.bf16.msra.mxu0 0
    %768 = vmatprep.subr.bf16.mxu0 0
    %769 = vmatpush1.bf16.msra.mxu0 0
    %770 = vmatprep.subr.bf16.mxu0 0
    %771 = vmatpush1.bf16.msra.mxu0 0
    %772 = vmatprep.subr.bf16.mxu0 0
    %773 = vmatpush1.bf16.msra.mxu0 %v208
    %774 = vmatprep.subr.bf16.mxu0 0
    %775 = vmatpush1.bf16.msra.mxu0 %v207
    %776 = vmatprep.subr.bf16.mxu0 0
    %777 = vmatpush2.bf16.msra.mxu0 0
    %778 = vmatprep.subr.bf16.mxu0 0
    %779 = vmatpush2.bf16.msra.mxu0 0
    %780 = vmatprep.subr.bf16.mxu0 0
    %781 = vmatpush2.bf16.msra.mxu0 0
    %782 = vmatprep.subr.bf16.mxu0 0
    %783 = vmatpush2.bf16.msra.mxu0 0
    %784 = vmatprep.subr.bf16.mxu0 0
    %785 = vmatpush2.bf16.msra.mxu0 0
    %786 = vmatprep.subr.bf16.mxu0 0
    %787 = vmatpush2.bf16.msra.mxu0 0
    %788 = vmatprep.subr.bf16.mxu0 0
    %789 = vmatpush2.bf16.msra.mxu0 0
    %790 = vmatprep.subr.bf16.mxu0 0
    %791 = vmatpush2.bf16.msra.mxu0 0
    %792 = vmatprep.mubr.bf16.mxu0 0
    %793 = vmatmul.mubr.bf16.gmra.mxu0 %v758
    %v794 = vpop.f32.mrf.mxu0
    %v795 = vadd.f32 0.0, %v794
    %v796 = vpop.f32.mrf.mxu0
    %v797 = vpop.f32.mrf.mxu0
    %v798 = vpop.f32.mrf.mxu0
    %799 = vdwg.mxu0
    %v800 = vadd.f32 %v752, %v795
    %v801 = vmul.f32 %v800, %v66
    %v802 = vtanh.pop %v801
    %v803 = vmul.f32 %v802, %v66
    %v804 = vadd.f32 %v803, %v67
    %v805 = vmul.f32 %v804, %v737
    %807 = vrot.lane.b32.xlu0 %v804, 64
    %v808 = vpop.permute.xlu0 %807
    %v810 = vmul.f32 %v804, %v808
    %812 = vrot.lane.b32.xlu0 %v810, 32
    %v813 = vpop.permute.xlu0 %812
    %v815 = vadd.f32 %v805, %v813
    %v816 = vtanh.pop %v815
    %818 = vrot.lane.b32.xlu0 %v816, 64
    %v819 = vpop.permute.xlu0 %818
    %v821 = vmul.f32 %v804, %v819
    %823 = vrot.lane.b32.xlu0 %v821, 32
    %v824 = vpop.permute.xlu0 %823
    %v826 = vsel %vm211, %v824, 0.0
    %s827 = scalar_lea.vmem [#allocation3], 56
    %828 = vst [vmem:[%s827] sm:$0xff] %v826
    %v829 = vld [vmem:[#allocation3] sm:$0xff]
    %v830 = vld [vmem:[#allocation3 + $0x8] sm:$0xff]
    %v831 = vld [vmem:[#allocation3 + $0x10] sm:$0xff]
    %v832 = vld [vmem:[#allocation3 + $0x18] sm:$0xff]
    %v833 = vld [vmem:[#allocation3 + $0x20] sm:$0xff]
    %v834 = vld [vmem:[#allocation3 + $0x28] sm:$0xff]
    %v835 = vld [vmem:[#allocation3 + $0x30] sm:$0xff]
    %v836 = vld [vmem:[#allocation3 + $0x38] sm:$0xff]
    %v837 = vpack.c.bf16 %v830, %v829
    %v838 = vpack.c.bf16 %v832, %v831
    %v839 = vpack.c.bf16 %v834, %v833
    %v840 = vpack.c.bf16 %v836, %v835
    %v841 = vld [vmem:[%s4] sm:$0xf]
    %v842 = vld [vmem:[%s4 + $0x4] sm:$0xf]
    %v843 = vld [vmem:[%s4 + $0x8] sm:$0xf]
    %v844 = vld [vmem:[%s4 + $0xc] sm:$0xf]
    %v845 = vld [vmem:[%s4 + $0x10] sm:$0xf]
    %v846 = vld [vmem:[%s4 + $0x14] sm:$0xf]
    %v847 = vld [vmem:[%s4 + $0x18] sm:$0xf]
    %v848 = vld [vmem:[%s4 + $0x1c] sm:$0xf]
    %v849 = vld [vmem:[%s4 + $0x20] sm:$0xf]
    %v850 = vld [vmem:[%s4 + $0x24] sm:$0xf]
    %v851 = vld [vmem:[%s4 + $0x28] sm:$0xf]
    %v852 = vld [vmem:[%s4 + $0x2c] sm:$0xf]
    %v853 = vld [vmem:[%s4 + $0x30] sm:$0xf]
    %v854 = vld [vmem:[%s4 + $0x34] sm:$0xf]
    %v855 = vld [vmem:[%s4 + $0x38] sm:$0xf]
    %v856 = vld [vmem:[%s4 + $0x3c] sm:$0xf]
    %v857 = vld [vmem:[%s6] sm:$0x1]
    %v859 = vlaneseq
    %v860 = vshrl.u32 %v859, 7
    %v861 = vsub.s32 0, %v860
    %v862 = vrot.slane %v857, %v861
    %v880 = vunpack.c.l.b16 %v841
    %v881 = vunpack.c.l.b16 %v842
    %v882 = vunpack.c.l.b16 %v843
    %v883 = vunpack.c.l.b16 %v844
    %v884 = vunpack.c.l.b16 %v845
    %v885 = vunpack.c.l.b16 %v846
    %v886 = vunpack.c.l.b16 %v847
    %v887 = vunpack.c.l.b16 %v848
    %v888 = vunpack.c.l.b16 %v849
    %v889 = vunpack.c.l.b16 %v850
    %v890 = vunpack.c.l.b16 %v851
    %v891 = vunpack.c.l.b16 %v852
    %v892 = vunpack.c.l.b16 %v853
    %v893 = vunpack.c.l.b16 %v854
    %v894 = vunpack.c.l.b16 %v855
    %v895 = vunpack.c.l.b16 %v856
    %v896 = vpack.c.b16 %v881, %v880
    %v897 = vpack.c.b16 %v883, %v882
    %v898 = vpack.c.b16 %v885, %v884
    %v899 = vpack.c.b16 %v887, %v886
    %v900 = vpack.c.b16 %v889, %v888
    %v901 = vpack.c.b16 %v891, %v890
    %v902 = vpack.c.b16 %v893, %v892
    %v903 = vpack.c.b16 %v895, %v894
    %912 = vmatprep.subr.bf16.mxu0 0
    %913 = vmatpush1.bf16.msra.mxu0 %v903
    %914 = vmatprep.subr.bf16.mxu0 0
    %915 = vmatpush1.bf16.msra.mxu0 %v902
    %916 = vmatprep.subr.bf16.mxu0 0
    %917 = vmatpush1.bf16.msra.mxu0 %v901
    %918 = vmatprep.subr.bf16.mxu0 0
    %919 = vmatpush1.bf16.msra.mxu0 %v900
    %920 = vmatprep.subr.bf16.mxu0 0
    %921 = vmatpush1.bf16.msra.mxu0 %v899
    %922 = vmatprep.subr.bf16.mxu0 0
    %923 = vmatpush1.bf16.msra.mxu0 %v898
    %924 = vmatprep.subr.bf16.mxu0 0
    %925 = vmatpush1.bf16.msra.mxu0 %v897
    %926 = vmatprep.subr.bf16.mxu0 0
    %927 = vmatpush1.bf16.msra.mxu0 %v896
    %928 = vmatprep.subr.bf16.mxu0 0
    %929 = vmatpush2.bf16.msra.mxu0 0
    %930 = vmatprep.subr.bf16.mxu0 0
    %931 = vmatpush2.bf16.msra.mxu0 0
    %932 = vmatprep.subr.bf16.mxu0 0
    %933 = vmatpush2.bf16.msra.mxu0 0
    %934 = vmatprep.subr.bf16.mxu0 0
    %935 = vmatpush2.bf16.msra.mxu0 0
    %936 = vmatprep.subr.bf16.mxu0 0
    %937 = vmatpush2.bf16.msra.mxu0 0
    %938 = vmatprep.subr.bf16.mxu0 0
    %939 = vmatpush2.bf16.msra.mxu0 0
    %940 = vmatprep.subr.bf16.mxu0 0
    %941 = vmatpush2.bf16.msra.mxu0 0
    %942 = vmatprep.subr.bf16.mxu0 0
    %943 = vmatpush2.bf16.msra.mxu0 0
    %944 = vmatprep.mubr.bf16.mxu0 0
    %945 = vmatmul.mubr.bf16.gmra.mxu0 %v837
    %v946 = vpop.f32.mrf.mxu0
    %v947 = vadd.f32 %v862, %v946
    %v948 = vpop.f32.mrf.mxu0
    %v949 = vpop.f32.mrf.mxu0
    %v950 = vadd.f32 %v862, %v949
    %v951 = vpop.f32.mrf.mxu0
    %952 = vmatprep.mubr.bf16.mxu0 0
    %953 = vmatmul.mubr.bf16.gmra.mxu0 %v838
    %v954 = vpop.f32.mrf.mxu0
    %v955 = vadd.f32 %v862, %v954
    %v956 = vpop.f32.mrf.mxu0
    %v957 = vpop.f32.mrf.mxu0
    %v958 = vadd.f32 %v862, %v957
    %v959 = vpop.f32.mrf.mxu0
    %960 = vmatprep.mubr.bf16.mxu0 0
    %961 = vmatmul.mubr.bf16.gmra.mxu0 %v839
    %v962 = vpop.f32.mrf.mxu0
    %v963 = vadd.f32 %v862, %v962
    %v964 = vpop.f32.mrf.mxu0
    %v965 = vpop.f32.mrf.mxu0
    %v966 = vadd.f32 %v862, %v965
    %v967 = vpop.f32.mrf.mxu0
    %968 = vmatprep.mubr.bf16.mxu0 0
    %969 = vmatmul.mubr.bf16.gmra.mxu0 %v840
    %v970 = vpop.f32.mrf.mxu0
    %v971 = vadd.f32 %v862, %v970
    %v972 = vpop.f32.mrf.mxu0
    %v973 = vpop.f32.mrf.mxu0
    %v974 = vadd.f32 %v862, %v973
    %v975 = vpop.f32.mrf.mxu0
    %976 = vdwg.mxu0
    %977 = vst [vmem:[#allocation2] sm:$0xff] %v947
    %978 = vst [vmem:[#allocation2 + $0x8] sm:$0xff] %v950
    %979 = vst [vmem:[#allocation2 + $0x10] sm:$0xff] %v955
    %980 = vst [vmem:[#allocation2 + $0x18] sm:$0xff] %v958
    %981 = vst [vmem:[#allocation2 + $0x20] sm:$0xff] %v963
    %982 = vst [vmem:[#allocation2 + $0x28] sm:$0xff] %v966
    %983 = vst [vmem:[#allocation2 + $0x30] sm:$0xff] %v971
    %984 = vst [vmem:[#allocation2 + $0x38] sm:$0xff] %v974
    %v985 = vld [vmem:[#allocation4] sm:$0xf]
    %v986 = vld [vmem:[#allocation4 + $0x4] sm:$0xf]
    %v987 = vld [vmem:[#allocation4 + $0x8] sm:$0xf]
    %v988 = vld [vmem:[#allocation4 + $0xc] sm:$0xf]
    %v989 = vld [vmem:[#allocation2] sm:$0xff]
    %v994 = vunpack.c.l.b16 %v985
    %v995 = vunpack.c.l.b16 %v986
    %v996 = vunpack.c.l.b16 %v987
    %v997 = vunpack.c.l.b16 %v988
    %v998 = vpack.c.b16 %v995, %v994
    %v999 = vpack.c.b16 %v997, %v996
    %1002 = vmatprep.subr.bf16.mxu0 0
    %1003 = vmatpush1.bf16.msra.mxu0 0
    %1004 = vmatprep.subr.bf16.mxu0 0
    %1005 = vmatpush1.bf16.msra.mxu0 0
    %1006 = vmatprep.subr.bf16.mxu0 0
    %1007 = vmatpush1.bf16.msra.mxu0 0
    %1008 = vmatprep.subr.bf16.mxu0 0
    %1009 = vmatpush1.bf16.msra.mxu0 0
    %1010 = vmatprep.subr.bf16.mxu0 0
    %1011 = vmatpush1.bf16.msra.mxu0 0
    %1012 = vmatprep.subr.bf16.mxu0 0
    %1013 = vmatpush1.bf16.msra.mxu0 0
    %1014 = vmatprep.subr.bf16.mxu0 0
    %1015 = vmatpush1.bf16.msra.mxu0 %v999
    %1016 = vmatprep.subr.bf16.mxu0 0
    %1017 = vmatpush1.bf16.msra.mxu0 %v998
    %1018 = vmatprep.subr.bf16.mxu0 0
    %1019 = vmatpush2.bf16.msra.mxu0 0
    %1020 = vmatprep.subr.bf16.mxu0 0
    %1021 = vmatpush2.bf16.msra.mxu0 0
    %1022 = vmatprep.subr.bf16.mxu0 0
    %1023 = vmatpush2.bf16.msra.mxu0 0
    %1024 = vmatprep.subr.bf16.mxu0 0
    %1025 = vmatpush2.bf16.msra.mxu0 0
    %1026 = vmatprep.subr.bf16.mxu0 0
    %1027 = vmatpush2.bf16.msra.mxu0 0
    %1028 = vmatprep.subr.bf16.mxu0 0
    %1029 = vmatpush2.bf16.msra.mxu0 0
    %1030 = vmatprep.subr.bf16.mxu0 0
    %1031 = vmatpush2.bf16.msra.mxu0 0
    %1032 = vmatprep.subr.bf16.mxu0 0
    %1033 = vmatpush2.bf16.msra.mxu0 0
    %1034 = vmatprep.mubr.bf16.mxu0 0
    %1035 = vmatmul.mubr.bf16.gmra.mxu0 %v213
    %v1036 = vpop.f32.mrf.mxu0
    %v1037 = vadd.f32 0.0, %v1036
    %v1038 = vpop.f32.mrf.mxu0
    %v1039 = vpop.f32.mrf.mxu0
    %v1040 = vpop.f32.mrf.mxu0
    %1041 = vdwg.mxu0
    %v1042 = vadd.f32 %v989, %v1037
    %v1043 = vmul.f32 %v1042, %v66
    %v1044 = vtanh.pop %v1043
    %v1045 = vmul.f32 %v1044, %v66
    %v1046 = vadd.f32 %v1045, %v67
    %v1047 = vmul.f32 %v1046, 0.0
    %1049 = vrot.lane.b32.xlu0 %v1046, 64
    %v1050 = vpop.permute.xlu0 %1049
    %v1052 = vmul.f32 %v1046, %v1050
    %1054 = vrot.lane.b32.xlu0 %v1052, 32
    %v1055 = vpop.permute.xlu0 %1054
    %v1057 = vadd.f32 %v1047, %v1055
    %v1058 = vtanh.pop %v1057
    %1060 = vrot.lane.b32.xlu0 %v1058, 64
    %v1061 = vpop.permute.xlu0 %1060
    %v1063 = vmul.f32 %v1046, %v1061
    %v1064 = vld [vmem:[%s283] sm:$0xff]
    %v1065 = vpack.c.bf16 %v1063, %v1063
    %1067 = vrot.lane.b32.xlu0 %v1065, 32
    %v1068 = vpop.permute.xlu0 %1067
    %v1070 = vsel %vm211, %v1068, 0
    %1072 = vmatprep.subr.bf16.mxu0 0
    %1073 = vmatpush1.bf16.msra.mxu0 0
    %1074 = vmatprep.subr.bf16.mxu0 0
    %1075 = vmatpush1.bf16.msra.mxu0 0
    %1076 = vmatprep.subr.bf16.mxu0 0
    %1077 = vmatpush1.bf16.msra.mxu0 0
    %1078 = vmatprep.subr.bf16.mxu0 0
    %1079 = vmatpush1.bf16.msra.mxu0 0
    %1080 = vmatprep.subr.bf16.mxu0 0
    %1081 = vmatpush1.bf16.msra.mxu0 0
    %1082 = vmatprep.subr.bf16.mxu0 0
    %1083 = vmatpush1.bf16.msra.mxu0 0
    %1084 = vmatprep.subr.bf16.mxu0 0
    %1085 = vmatpush1.bf16.msra.mxu0 %v999
    %1086 = vmatprep.subr.bf16.mxu0 0
    %1087 = vmatpush1.bf16.msra.mxu0 %v998
    %1088 = vmatprep.subr.bf16.mxu0 0
    %1089 = vmatpush2.bf16.msra.mxu0 0
    %1090 = vmatprep.subr.bf16.mxu0 0
    %1091 = vmatpush2.bf16.msra.mxu0 0
    %1092 = vmatprep.subr.bf16.mxu0 0
    %1093 = vmatpush2.bf16.msra.mxu0 0
    %1094 = vmatprep.subr.bf16.mxu0 0
    %1095 = vmatpush2.bf16.msra.mxu0 0
    %1096 = vmatprep.subr.bf16.mxu0 0
    %1097 = vmatpush2.bf16.msra.mxu0 0
    %1098 = vmatprep.subr.bf16.mxu0 0
    %1099 = vmatpush2.bf16.msra.mxu0 0
    %1100 = vmatprep.subr.bf16.mxu0 0
    %1101 = vmatpush2.bf16.msra.mxu0 0
    %1102 = vmatprep.subr.bf16.mxu0 0
    %1103 = vmatpush2.bf16.msra.mxu0 0
    %1104 = vmatprep.mubr.bf16.mxu0 0
    %1105 = vmatmul.mubr.bf16.gmra.mxu0 %v1070
    %v1106 = vpop.f32.mrf.mxu0
    %v1107 = vadd.f32 0.0, %v1106
    %v1108 = vpop.f32.mrf.mxu0
    %v1109 = vpop.f32.mrf.mxu0
    %v1110 = vpop.f32.mrf.mxu0
    %1111 = vdwg.mxu0
    %v1112 = vadd.f32 %v1064, %v1107
    %v1113 = vmul.f32 %v1112, %v66
    %v1114 = vtanh.pop %v1113
    %v1115 = vmul.f32 %v1114, %v66
    %v1116 = vadd.f32 %v1115, %v67
    %v1117 = vmul.f32 %v1116, %v1057
    %1119 = vrot.lane.b32.xlu0 %v1116, 64
    %v1120 = vpop.permute.xlu0 %1119
    %v1122 = vmul.f32 %v1116, %v1120
    %1124 = vrot.lane.b32.xlu0 %v1122, 32
    %v1125 = vpop.permute.xlu0 %1124
    %v1127 = vadd.f32 %v1117, %v1125
    %v1128 = vtanh.pop %v1127
    %1130 = vrot.lane.b32.xlu0 %v1128, 64
    %v1131 = vpop.permute.xlu0 %1130
    %v1133 = vmul.f32 %v1116, %v1131
    %v1134 = vld [vmem:[%s361] sm:$0xff]
    %v1135 = vpack.c.bf16 %v1133, %v1133
    %1137 = vrot.lane.b32.xlu0 %v1135, 32
    %v1138 = vpop.permute.xlu0 %1137
    %v1140 = vsel %vm211, %v1138, 0
    %1142 = vmatprep.subr.bf16.mxu0 0
    %1143 = vmatpush1.bf16.msra.mxu0 0
    %1144 = vmatprep.subr.bf16.mxu0 0
    %1145 = vmatpush1.bf16.msra.mxu0 0
    %1146 = vmatprep.subr.bf16.mxu0 0
    %1147 = vmatpush1.bf16.msra.mxu0 0
    %1148 = vmatprep.subr.bf16.mxu0 0
    %1149 = vmatpush1.bf16.msra.mxu0 0
    %1150 = vmatprep.subr.bf16.mxu0 0
    %1151 = vmatpush1.bf16.msra.mxu0 0
    %1152 = vmatprep.subr.bf16.mxu0 0
    %1153 = vmatpush1.bf16.msra.mxu0 0
    %1154 = vmatprep.subr.bf16.mxu0 0
    %1155 = vmatpush1.bf16.msra.mxu0 %v999
    %1156 = vmatprep.subr.bf16.mxu0 0
    %1157 = vmatpush1.bf16.msra.mxu0 %v998
    %1158 = vmatprep.subr.bf16.mxu0 0
    %1159 = vmatpush2.bf16.msra.mxu0 0
    %1160 = vmatprep.subr.bf16.mxu0 0
    %1161 = vmatpush2.bf16.msra.mxu0 0
    %1162 = vmatprep.subr.bf16.mxu0 0
    %1163 = vmatpush2.bf16.msra.mxu0 0
    %1164 = vmatprep.subr.bf16.mxu0 0
    %1165 = vmatpush2.bf16.msra.mxu0 0
    %1166 = vmatprep.subr.bf16.mxu0 0
    %1167 = vmatpush2.bf16.msra.mxu0 0
    %1168 = vmatprep.subr.bf16.mxu0 0
    %1169 = vmatpush2.bf16.msra.mxu0 0
    %1170 = vmatprep.subr.bf16.mxu0 0
    %1171 = vmatpush2.bf16.msra.mxu0 0
    %1172 = vmatprep.subr.bf16.mxu0 0
    %1173 = vmatpush2.bf16.msra.mxu0 0
    %1174 = vmatprep.mubr.bf16.mxu0 0
    %1175 = vmatmul.mubr.bf16.gmra.mxu0 %v1140
    %v1176 = vpop.f32.mrf.mxu0
    %v1177 = vadd.f32 0.0, %v1176
    %v1178 = vpop.f32.mrf.mxu0
    %v1179 = vpop.f32.mrf.mxu0
    %v1180 = vpop.f32.mrf.mxu0
    %1181 = vdwg.mxu0
    %v1182 = vadd.f32 %v1134, %v1177
    %v1183 = vmul.f32 %v1182, %v66
    %v1184 = vtanh.pop %v1183
    %v1185 = vmul.f32 %v1184, %v66
    %v1186 = vadd.f32 %v1185, %v67
    %v1187 = vmul.f32 %v1186, %v1127
    %1189 = vrot.lane.b32.xlu0 %v1186, 64
    %v1190 = vpop.permute.xlu0 %1189
    %v1192 = vmul.f32 %v1186, %v1190
    %1194 = vrot.lane.b32.xlu0 %v1192, 32
    %v1195 = vpop.permute.xlu0 %1194
    %v1197 = vadd.f32 %v1187, %v1195
    %v1198 = vtanh.pop %v1197
    %1200 = vrot.lane.b32.xlu0 %v1198, 64
    %v1201 = vpop.permute.xlu0 %1200
    %v1203 = vmul.f32 %v1186, %v1201
    %v1204 = vld [vmem:[%s439] sm:$0xff]
    %v1205 = vpack.c.bf16 %v1203, %v1203
    %1207 = vrot.lane.b32.xlu0 %v1205, 32
    %v1208 = vpop.permute.xlu0 %1207
    %v1210 = vsel %vm211, %v1208, 0
    %1212 = vmatprep.subr.bf16.mxu0 0
    %1213 = vmatpush1.bf16.msra.mxu0 0
    %1214 = vmatprep.subr.bf16.mxu0 0
    %1215 = vmatpush1.bf16.msra.mxu0 0
    %1216 = vmatprep.subr.bf16.mxu0 0
    %1217 = vmatpush1.bf16.msra.mxu0 0
    %1218 = vmatprep.subr.bf16.mxu0 0
    %1219 = vmatpush1.bf16.msra.mxu0 0
    %1220 = vmatprep.subr.bf16.mxu0 0
    %1221 = vmatpush1.bf16.msra.mxu0 0
    %1222 = vmatprep.subr.bf16.mxu0 0
    %1223 = vmatpush1.bf16.msra.mxu0 0
    %1224 = vmatprep.subr.bf16.mxu0 0
    %1225 = vmatpush1.bf16.msra.mxu0 %v999
    %1226 = vmatprep.subr.bf16.mxu0 0
    %1227 = vmatpush1.bf16.msra.mxu0 %v998
    %1228 = vmatprep.subr.bf16.mxu0 0
    %1229 = vmatpush2.bf16.msra.mxu0 0
    %1230 = vmatprep.subr.bf16.mxu0 0
    %1231 = vmatpush2.bf16.msra.mxu0 0
    %1232 = vmatprep.subr.bf16.mxu0 0
    %1233 = vmatpush2.bf16.msra.mxu0 0
    %1234 = vmatprep.subr.bf16.mxu0 0
    %1235 = vmatpush2.bf16.msra.mxu0 0
    %1236 = vmatprep.subr.bf16.mxu0 0
    %1237 = vmatpush2.bf16.msra.mxu0 0
    %1238 = vmatprep.subr.bf16.mxu0 0
    %1239 = vmatpush2.bf16.msra.mxu0 0
    %1240 = vmatprep.subr.bf16.mxu0 0
    %1241 = vmatpush2.bf16.msra.mxu0 0
    %1242 = vmatprep.subr.bf16.mxu0 0
    %1243 = vmatpush2.bf16.msra.mxu0 0
    %1244 = vmatprep.mubr.bf16.mxu0 0
    %1245 = vmatmul.mubr.bf16.gmra.mxu0 %v1210
    %v1246 = vpop.f32.mrf.mxu0
    %v1247 = vadd.f32 0.0, %v1246
    %v1248 = vpop.f32.mrf.mxu0
    %v1249 = vpop.f32.mrf.mxu0
    %v1250 = vpop.f32.mrf.mxu0
    %1251 = vdwg.mxu0
    %v1252 = vadd.f32 %v1204, %v1247
    %v1253 = vmul.f32 %v1252, %v66
    %v1254 = vtanh.pop %v1253
    %v1255 = vmul.f32 %v1254, %v66
    %v1256 = vadd.f32 %v1255, %v67
    %v1257 = vmul.f32 %v1256, %v1197
    %1259 = vrot.lane.b32.xlu0 %v1256, 64
    %v1260 = vpop.permute.xlu0 %1259
    %v1262 = vmul.f32 %v1256, %v1260
    %1264 = vrot.lane.b32.xlu0 %v1262, 32
    %v1265 = vpop.permute.xlu0 %1264
    %v1267 = vadd.f32 %v1257, %v1265
    %v1268 = vtanh.pop %v1267
    %1270 = vrot.lane.b32.xlu0 %v1268, 64
    %v1271 = vpop.permute.xlu0 %1270
    %v1273 = vmul.f32 %v1256, %v1271
    %v1274 = vld [vmem:[%s517] sm:$0xff]
    %v1275 = vpack.c.bf16 %v1273, %v1273
    %1277 = vrot.lane.b32.xlu0 %v1275, 32
    %v1278 = vpop.permute.xlu0 %1277
    %v1280 = vsel %vm211, %v1278, 0
    %1282 = vmatprep.subr.bf16.mxu0 0
    %1283 = vmatpush1.bf16.msra.mxu0 0
    %1284 = vmatprep.subr.bf16.mxu0 0
    %1285 = vmatpush1.bf16.msra.mxu0 0
    %1286 = vmatprep.subr.bf16.mxu0 0
    %1287 = vmatpush1.bf16.msra.mxu0 0
    %1288 = vmatprep.subr.bf16.mxu0 0
    %1289 = vmatpush1.bf16.msra.mxu0 0
    %1290 = vmatprep.subr.bf16.mxu0 0
    %1291 = vmatpush1.bf16.msra.mxu0 0
    %1292 = vmatprep.subr.bf16.mxu0 0
    %1293 = vmatpush1.bf16.msra.mxu0 0
    %1294 = vmatprep.subr.bf16.mxu0 0
    %1295 = vmatpush1.bf16.msra.mxu0 %v999
    %1296 = vmatprep.subr.bf16.mxu0 0
    %1297 = vmatpush1.bf16.msra.mxu0 %v998
    %1298 = vmatprep.subr.bf16.mxu0 0
    %1299 = vmatpush2.bf16.msra.mxu0 0
    %1300 = vmatprep.subr.bf16.mxu0 0
    %1301 = vmatpush2.bf16.msra.mxu0 0
    %1302 = vmatprep.subr.bf16.mxu0 0
    %1303 = vmatpush2.bf16.msra.mxu0 0
    %1304 = vmatprep.subr.bf16.mxu0 0
    %1305 = vmatpush2.bf16.msra.mxu0 0
    %1306 = vmatprep.subr.bf16.mxu0 0
    %1307 = vmatpush2.bf16.msra.mxu0 0
    %1308 = vmatprep.subr.bf16.mxu0 0
    %1309 = vmatpush2.bf16.msra.mxu0 0
    %1310 = vmatprep.subr.bf16.mxu0 0
    %1311 = vmatpush2.bf16.msra.mxu0 0
    %1312 = vmatprep.subr.bf16.mxu0 0
    %1313 = vmatpush2.bf16.msra.mxu0 0
    %1314 = vmatprep.mubr.bf16.mxu0 0
    %1315 = vmatmul.mubr.bf16.gmra.mxu0 %v1280
    %v1316 = vpop.f32.mrf.mxu0
    %v1317 = vadd.f32 0.0, %v1316
    %v1318 = vpop.f32.mrf.mxu0
    %v1319 = vpop.f32.mrf.mxu0
    %v1320 = vpop.f32.mrf.mxu0
    %1321 = vdwg.mxu0
    %v1322 = vadd.f32 %v1274, %v1317
    %v1323 = vmul.f32 %v1322, %v66
    %v1324 = vtanh.pop %v1323
    %v1325 = vmul.f32 %v1324, %v66
    %v1326 = vadd.f32 %v1325, %v67
    %v1327 = vmul.f32 %v1326, %v1267
    %1329 = vrot.lane.b32.xlu0 %v1326, 64
    %v1330 = vpop.permute.xlu0 %1329
    %v1332 = vmul.f32 %v1326, %v1330
    %1334 = vrot.lane.b32.xlu0 %v1332, 32
    %v1335 = vpop.permute.xlu0 %1334
    %v1337 = vadd.f32 %v1327, %v1335
    %v1338 = vtanh.pop %v1337
    %1340 = vrot.lane.b32.xlu0 %v1338, 64
    %v1341 = vpop.permute.xlu0 %1340
    %v1343 = vmul.f32 %v1326, %v1341
    %v1344 = vld [vmem:[%s595] sm:$0xff]
    %v1345 = vpack.c.bf16 %v1343, %v1343
    %1347 = vrot.lane.b32.xlu0 %v1345, 32
    %v1348 = vpop.permute.xlu0 %1347
    %v1350 = vsel %vm211, %v1348, 0
    %1352 = vmatprep.subr.bf16.mxu0 0
    %1353 = vmatpush1.bf16.msra.mxu0 0
    %1354 = vmatprep.subr.bf16.mxu0 0
    %1355 = vmatpush1.bf16.msra.mxu0 0
    %1356 = vmatprep.subr.bf16.mxu0 0
    %1357 = vmatpush1.bf16.msra.mxu0 0
    %1358 = vmatprep.subr.bf16.mxu0 0
    %1359 = vmatpush1.bf16.msra.mxu0 0
    %1360 = vmatprep.subr.bf16.mxu0 0
    %1361 = vmatpush1.bf16.msra.mxu0 0
    %1362 = vmatprep.subr.bf16.mxu0 0
    %1363 = vmatpush1.bf16.msra.mxu0 0
    %1364 = vmatprep.subr.bf16.mxu0 0
    %1365 = vmatpush1.bf16.msra.mxu0 %v999
    %1366 = vmatprep.subr.bf16.mxu0 0
    %1367 = vmatpush1.bf16.msra.mxu0 %v998
    %1368 = vmatprep.subr.bf16.mxu0 0
    %1369 = vmatpush2.bf16.msra.mxu0 0
    %1370 = vmatprep.subr.bf16.mxu0 0
    %1371 = vmatpush2.bf16.msra.mxu0 0
    %1372 = vmatprep.subr.bf16.mxu0 0
    %1373 = vmatpush2.bf16.msra.mxu0 0
    %1374 = vmatprep.subr.bf16.mxu0 0
    %1375 = vmatpush2.bf16.msra.mxu0 0
    %1376 = vmatprep.subr.bf16.mxu0 0
    %1377 = vmatpush2.bf16.msra.mxu0 0
    %1378 = vmatprep.subr.bf16.mxu0 0
    %1379 = vmatpush2.bf16.msra.mxu0 0
    %1380 = vmatprep.subr.bf16.mxu0 0
    %1381 = vmatpush2.bf16.msra.mxu0 0
    %1382 = vmatprep.subr.bf16.mxu0 0
    %1383 = vmatpush2.bf16.msra.mxu0 0
    %1384 = vmatprep.mubr.bf16.mxu0 0
    %1385 = vmatmul.mubr.bf16.gmra.mxu0 %v1350
    %v1386 = vpop.f32.mrf.mxu0
    %v1387 = vadd.f32 0.0, %v1386
    %v1388 = vpop.f32.mrf.mxu0
    %v1389 = vpop.f32.mrf.mxu0
    %v1390 = vpop.f32.mrf.mxu0
    %1391 = vdwg.mxu0
    %v1392 = vadd.f32 %v1344, %v1387
    %v1393 = vmul.f32 %v1392, %v66
    %v1394 = vtanh.pop %v1393
    %v1395 = vmul.f32 %v1394, %v66
    %v1396 = vadd.f32 %v1395, %v67
    %v1397 = vmul.f32 %v1396, %v1337
    %1399 = vrot.lane.b32.xlu0 %v1396, 64
    %v1400 = vpop.permute.xlu0 %1399
    %v1402 = vmul.f32 %v1396, %v1400
    %1404 = vrot.lane.b32.xlu0 %v1402, 32
    %v1405 = vpop.permute.xlu0 %1404
    %v1407 = vadd.f32 %v1397, %v1405
    %v1408 = vtanh.pop %v1407
    %1410 = vrot.lane.b32.xlu0 %v1408, 64
    %v1411 = vpop.permute.xlu0 %1410
    %v1413 = vmul.f32 %v1396, %v1411
    %v1414 = vld [vmem:[%s673] sm:$0xff]
    %v1415 = vpack.c.bf16 %v1413, %v1413
    %1417 = vrot.lane.b32.xlu0 %v1415, 32
    %v1418 = vpop.permute.xlu0 %1417
    %v1420 = vsel %vm211, %v1418, 0
    %1422 = vmatprep.subr.bf16.mxu0 0
    %1423 = vmatpush1.bf16.msra.mxu0 0
    %1424 = vmatprep.subr.bf16.mxu0 0
    %1425 = vmatpush1.bf16.msra.mxu0 0
    %1426 = vmatprep.subr.bf16.mxu0 0
    %1427 = vmatpush1.bf16.msra.mxu0 0
    %1428 = vmatprep.subr.bf16.mxu0 0
    %1429 = vmatpush1.bf16.msra.mxu0 0
    %1430 = vmatprep.subr.bf16.mxu0 0
    %1431 = vmatpush1.bf16.msra.mxu0 0
    %1432 = vmatprep.subr.bf16.mxu0 0
    %1433 = vmatpush1.bf16.msra.mxu0 0
    %1434 = vmatprep.subr.bf16.mxu0 0
    %1435 = vmatpush1.bf16.msra.mxu0 %v999
    %1436 = vmatprep.subr.bf16.mxu0 0
    %1437 = vmatpush1.bf16.msra.mxu0 %v998
    %1438 = vmatprep.subr.bf16.mxu0 0
    %1439 = vmatpush2.bf16.msra.mxu0 0
    %1440 = vmatprep.subr.bf16.mxu0 0
    %1441 = vmatpush2.bf16.msra.mxu0 0
    %1442 = vmatprep.subr.bf16.mxu0 0
    %1443 = vmatpush2.bf16.msra.mxu0 0
    %1444 = vmatprep.subr.bf16.mxu0 0
    %1445 = vmatpush2.bf16.msra.mxu0 0
    %1446 = vmatprep.subr.bf16.mxu0 0
    %1447 = vmatpush2.bf16.msra.mxu0 0
    %1448 = vmatprep.subr.bf16.mxu0 0
    %1449 = vmatpush2.bf16.msra.mxu0 0
    %1450 = vmatprep.subr.bf16.mxu0 0
    %1451 = vmatpush2.bf16.msra.mxu0 0
    %1452 = vmatprep.subr.bf16.mxu0 0
    %1453 = vmatpush2.bf16.msra.mxu0 0
    %1454 = vmatprep.mubr.bf16.mxu0 0
    %1455 = vmatmul.mubr.bf16.gmra.mxu0 %v1420
    %v1456 = vpop.f32.mrf.mxu0
    %v1457 = vadd.f32 0.0, %v1456
    %v1458 = vpop.f32.mrf.mxu0
    %v1459 = vpop.f32.mrf.mxu0
    %v1460 = vpop.f32.mrf.mxu0
    %1461 = vdwg.mxu0
    %v1462 = vadd.f32 %v1414, %v1457
    %v1463 = vmul.f32 %v1462, %v66
    %v1464 = vtanh.pop %v1463
    %v1465 = vmul.f32 %v1464, %v66
    %v1466 = vadd.f32 %v1465, %v67
    %v1467 = vmul.f32 %v1466, %v1407
    %1469 = vrot.lane.b32.xlu0 %v1466, 64
    %v1470 = vpop.permute.xlu0 %1469
    %v1472 = vmul.f32 %v1466, %v1470
    %1474 = vrot.lane.b32.xlu0 %v1472, 32
    %v1475 = vpop.permute.xlu0 %1474
    %v1477 = vadd.f32 %v1467, %v1475
    %v1478 = vtanh.pop %v1477
    %1480 = vrot.lane.b32.xlu0 %v1478, 64
    %v1481 = vpop.permute.xlu0 %1480
    %v1483 = vmul.f32 %v1466, %v1481
    %v1484 = vld [vmem:[%s751] sm:$0xff]
    %v1485 = vpack.c.bf16 %v1483, %v1483
    %1487 = vrot.lane.b32.xlu0 %v1485, 32
    %v1488 = vpop.permute.xlu0 %1487
    %v1490 = vsel %vm211, %v1488, 0
    %1492 = vmatprep.subr.bf16.mxu0 0
    %1493 = vmatpush1.bf16.msra.mxu0 0
    %1494 = vmatprep.subr.bf16.mxu0 0
    %1495 = vmatpush1.bf16.msra.mxu0 0
    %1496 = vmatprep.subr.bf16.mxu0 0
    %1497 = vmatpush1.bf16.msra.mxu0 0
    %1498 = vmatprep.subr.bf16.mxu0 0
    %1499 = vmatpush1.bf16.msra.mxu0 0
    %1500 = vmatprep.subr.bf16.mxu0 0
    %1501 = vmatpush1.bf16.msra.mxu0 0
    %1502 = vmatprep.subr.bf16.mxu0 0
    %1503 = vmatpush1.bf16.msra.mxu0 0
    %1504 = vmatprep.subr.bf16.mxu0 0
    %1505 = vmatpush1.bf16.msra.mxu0 %v999
    %1506 = vmatprep.subr.bf16.mxu0 0
    %1507 = vmatpush1.bf16.msra.mxu0 %v998
    %1508 = vmatprep.subr.bf16.mxu0 0
    %1509 = vmatpush2.bf16.msra.mxu0 0
    %1510 = vmatprep.subr.bf16.mxu0 0
    %1511 = vmatpush2.bf16.msra.mxu0 0
    %1512 = vmatprep.subr.bf16.mxu0 0
    %1513 = vmatpush2.bf16.msra.mxu0 0
    %1514 = vmatprep.subr.bf16.mxu0 0
    %1515 = vmatpush2.bf16.msra.mxu0 0
    %1516 = vmatprep.subr.bf16.mxu0 0
    %1517 = vmatpush2.bf16.msra.mxu0 0
    %1518 = vmatprep.subr.bf16.mxu0 0
    %1519 = vmatpush2.bf16.msra.mxu0 0
    %1520 = vmatprep.subr.bf16.mxu0 0
    %1521 = vmatpush2.bf16.msra.mxu0 0
    %1522 = vmatprep.subr.bf16.mxu0 0
    %1523 = vmatpush2.bf16.msra.mxu0 0
    %1524 = vmatprep.mubr.bf16.mxu0 0
    %1525 = vmatmul.mubr.bf16.gmra.mxu0 %v1490
    %v1526 = vpop.f32.mrf.mxu0
    %v1527 = vadd.f32 0.0, %v1526
    %v1528 = vpop.f32.mrf.mxu0
    %v1529 = vpop.f32.mrf.mxu0
    %v1530 = vpop.f32.mrf.mxu0
    %1531 = vdwg.mxu0
    %v1532 = vadd.f32 %v1484, %v1527
    %v1533 = vmul.f32 %v1532, %v66
    %v1534 = vtanh.pop %v1533
    %v1535 = vmul.f32 %v1534, %v66
    %v1536 = vadd.f32 %v1535, %v67
    %v1537 = vmul.f32 %v1536, %v1477
    %1539 = vrot.lane.b32.xlu0 %v1536, 64
    %v1540 = vpop.permute.xlu0 %1539
    %v1542 = vmul.f32 %v1536, %v1540
    %1544 = vrot.lane.b32.xlu0 %v1542, 32
    %v1545 = vpop.permute.xlu0 %1544
    %v1547 = vadd.f32 %v1537, %v1545
    %v1548 = vtanh.pop %v1547
    %1550 = vrot.lane.b32.xlu0 %v1548, 64
    %v1551 = vpop.permute.xlu0 %1550
    %v1553 = vmul.f32 %v1536, %v1551
    %v1554 = vld [vmem:[#allocation6] sm:$0xff]
    %v1555 = vld [vmem:[#allocation6 + $0x8] sm:$0xff]
    %v1556 = vld [vmem:[#allocation6 + $0x10] sm:$0xff]
    %v1557 = vld [vmem:[#allocation6 + $0x18] sm:$0xff]
    %v1558 = vld [vmem:[%s8] sm:$0x1]
    %v1560 = vlaneseq
    %v1561 = vshrl.u32 %v1560, 7
    %v1562 = vsub.s32 0, %v1561
    %v1563 = vrot.slane %v1558, %v1562
    %1566 = vrot.lane.b32.xlu0 %v1553, 32
    %v1567 = vpop.permute.xlu0 %1566
    %v1568 = vsel %vm211, %v1567, 0
    %1570 = vmatprep.subr.mxu0 0.0
    %1571 = vmatpush1.msra.mxu0 0.0
    %1572 = vmatprep.subr.mxu0 0.0
    %1573 = vmatpush1.msra.mxu0 0.0
    %1574 = vmatprep.subr.mxu0 0.0
    %1575 = vmatpush1.msra.mxu0 0.0
    %1576 = vmatprep.subr.mxu0 0.0
    %1577 = vmatpush1.msra.mxu0 0.0
    %1578 = vmatprep.subr.mxu0 0.0
    %1579 = vmatpush1.msra.mxu0 0.0
    %1580 = vmatprep.subr.mxu0 0.0
    %1581 = vmatpush1.msra.mxu0 0.0
    %1582 = vmatprep.subr.mxu0 0.0
    %1583 = vmatpush1.msra.mxu0 0.0
    %1584 = vmatprep.subr.mxu0 0.0
    %1585 = vmatpush1.msra.mxu0 0.0
    %1586 = vmatprep.subr.mxu0 0.0
    %1587 = vmatpush1.msra.mxu0 0.0
    %1588 = vmatprep.subr.mxu0 0.0
    %1589 = vmatpush1.msra.mxu0 0.0
    %1590 = vmatprep.subr.mxu0 0.0
    %1591 = vmatpush1.msra.mxu0 0.0
    %1592 = vmatprep.subr.mxu0 0.0
    %1593 = vmatpush1.msra.mxu0 0.0
    %1594 = vmatprep.subr.mxu0 0.0
    %1595 = vmatpush1.msra.mxu0 %v1557
    %1596 = vmatprep.subr.mxu0 0.0
    %1597 = vmatpush1.msra.mxu0 %v1556
    %1598 = vmatprep.subr.mxu0 0.0
    %1599 = vmatpush1.msra.mxu0 %v1555
    %1600 = vmatprep.subr.mxu0 0.0
    %1601 = vmatpush1.msra.mxu0 %v1554
    %1602 = vmatprep.subr.mxu0 0.0
    %1603 = vmatpush2.msra.mxu0 0.0
    %1604 = vmatprep.subr.mxu0 0.0
    %1605 = vmatpush2.msra.mxu0 0.0
    %1606 = vmatprep.subr.mxu0 0.0
    %1607 = vmatpush2.msra.mxu0 0.0
    %1608 = vmatprep.subr.mxu0 0.0
    %1609 = vmatpush2.msra.mxu0 0.0
    %1610 = vmatprep.subr.mxu0 0.0
    %1611 = vmatpush2.msra.mxu0 0.0
    %1612 = vmatprep.subr.mxu0 0.0
    %1613 = vmatpush2.msra.mxu0 0.0
    %1614 = vmatprep.subr.mxu0 0.0
    %1615 = vmatpush2.msra.mxu0 0.0
    %1616 = vmatprep.subr.mxu0 0.0
    %1617 = vmatpush2.msra.mxu0 0.0
    %1618 = vmatprep.subr.mxu0 0.0
    %1619 = vmatpush2.msra.mxu0 0.0
    %1620 = vmatprep.subr.mxu0 0.0
    %1621 = vmatpush2.msra.mxu0 0.0
    %1622 = vmatprep.subr.mxu0 0.0
    %1623 = vmatpush2.msra.mxu0 0.0
    %1624 = vmatprep.subr.mxu0 0.0
    %1625 = vmatpush2.msra.mxu0 0.0
    %1626 = vmatprep.subr.mxu0 0.0
    %1627 = vmatpush2.msra.mxu0 0.0
    %1628 = vmatprep.subr.mxu0 0.0
    %1629 = vmatpush2.msra.mxu0 0.0
    %1630 = vmatprep.subr.mxu0 0.0
    %1631 = vmatpush2.msra.mxu0 0.0
    %1632 = vmatprep.subr.mxu0 0.0
    %1633 = vmatpush2.msra.mxu0 0.0
    %1634 = vmatprep.mubr.f32.mxu0 0.0
    %1635 = vmatmul.mubr.f32.gmra.mxu0 %v1568
    %v1636 = vpop.f32.mrf.mxu0
    %v1637 = vadd.f32 %v1563, %v1636
    %v1638 = vpop.f32.mrf.mxu0
    %1639 = vdwg.mxu0
    %1640 = vst [vmem:[%s9] sm:$0xff] %v1637
    // Predicated region
    $region46: #{multivariate_lstm_forward.1} parent=1 // pred_check
      _
    $region47: #{multivariate_lstm_forward.1} parent=1 // pred_check_branch
      %1642 = sbr.rel (0) target = $region49
    $region48: #{multivariate_lstm_forward.1} parent=1 // pred_region
      _
    $region49: #{multivariate_lstm_forward.1} parent=1 // pred_fallthru
      _
    // Predicated region
    $region50: #{multivariate_lstm_forward.1} parent=1 // pred_check
      _
    $region51: #{multivariate_lstm_forward.1} parent=1 // pred_check_branch
      %1644 = sbr.rel (0) target = $region53
    $region52: #{multivariate_lstm_forward.1} parent=1 // pred_region
      _
    $region53: #{multivariate_lstm_forward.1} parent=1 // pred_fallthru
      _
    %1645 = vsyncpa [#allocation5], 1
    %1646 = vsyncpa [#allocation7], 1

</llo_original>
